<compile_context>
chip_gen: v5e
topology: v5e:2x2
jax: 0.10.0
libtpu: 0.0.40
codegen_flags: <defaults>
</compile_context>

<pallas_src>
import jax
import jax.numpy as jnp
from jax import lax
from jax.experimental import pallas as pl
from jax.experimental.pallas import tpu as pltpu


def _round_up(x, m):
    return (x + m - 1) // m * m


def _largest_divisor_leq(n, cap):
    for d in range(min(n, cap), 0, -1):
        if n % d == 0:
            return d
    return 1


def _fold_weight(weight, cout_padded):
    """Fold PyTorch OIHW conv weight (Co, C, 3, 3) + PixelUnshuffle(2) into an
    effective 3x3 conv over the space-to-depth(2) input.

    Returns (3, 3, 4*C, cout_padded):
      dims 0/1        = kh, kw taps on the H/2 x W/2 grid
      input channel   = ph*2*C + pw*C + ci   (ph, pw: sub-pixel parity of the input)
      output channel  = co*4 + dh*2 + dw     (== PixelUnshuffle(2) channel order)
    """
    Co, C = weight.shape[0], weight.shape[1]
    Cout4 = 4 * Co
    w = jnp.zeros((3, 3, 4 * C, cout_padded), weight.dtype)
    for a in (-1, 0, 1):
        for b in (-1, 0, 1):
            for ph in (0, 1):
                for pw in (0, 1):
                    blk = jnp.zeros((C, Co, 2, 2), weight.dtype)
                    touched = False
                    for dh in (0, 1):
                        kh = 2 * a + ph + 1 - dh
                        if not 0 <= kh <= 2:
                            continue
                        for dw in (0, 1):
                            kw = 2 * b + pw + 1 - dw
                            if not 0 <= kw <= 2:
                                continue
                            blk = blk.at[:, :, dh, dw].set(weight[:, :, kh, kw].T)
                            touched = True
                    if not touched:
                        continue
                    ci0 = (ph * 2 + pw) * C
                    w = w.at[a + 1, b + 1, ci0:ci0 + C, :Cout4].set(
                        blk.reshape(C, Cout4))
    return w


def _vmem_limits():
    """Generation-aware scoped-VMEM limit and per-step tiling budget."""
    phys = None
    try:
        info = pltpu.get_tpu_info()
        phys = getattr(info, "vmem_capacity_bytes", None)
    except Exception:
        phys = None
    if not phys:
        phys = 64 * 1024 * 1024          # conservative default (v7x per-TensorCore)
    limit = int(min(max(phys * 3 // 4, 32 * 1024 * 1024), 100 * 1024 * 1024))
    budget = int(limit * 0.6)            # leave headroom for compiler-internal scratch
    return limit, budget


def _pick_row_tile(H2, W2, Cin4, Coutp, in_bytes, out_bytes, budget, cap=64):
    """Largest row-tile TH whose estimated per-step working set fits the budget."""
    def usage(th):
        x_t = th * W2 * Cin4 * in_bytes * 2            # double-buffered input tile
        halo = 2 * W2 * Cin4 * in_bytes * 2            # two halo rows, double-buffered
        w_t = 9 * Cin4 * Coutp * in_bytes * 2          # resident folded weights
        o_t = th * W2 * Coutp * out_bytes * 2          # double-buffered output tile
        xp = (th + 2) * W2 * Cin4 * in_bytes           # H-halo scratch
        acc = th * W2 * Coutp * 4                      # f32 accumulator scratch
        tmp = 3 * th * W2 * max(Cin4 * in_bytes, Coutp * 4)   # roll/mask temporaries
        return x_t + halo + w_t + o_t + xp + acc + tmp

    th = 1
    for cand in range(2, min(cap, H2) + 1):
        if usage(cand) <= budget:
            th = cand
        else:
            break
    return th


def _conv_kernel(x_ref, top_ref, bot_ref, w_ref, o_ref, xp_ref, acc_ref):
    # x_ref  : (TH, W2, Cin4)       space-to-depth rows of this tile
    # top_ref: (1,  W2, Cin4)       row above the tile (clamped at the border)
    # bot_ref: (1,  W2, Cin4)       row below the tile (clamped at the border)
    # w_ref  : (3, Cin4, 3*Coutp)   folded weights; last dim = [kw0 | kw1 | kw2] blocks
    # o_ref  : (TH, W2, Coutp)      final unshuffled NHWC output tile
    # xp_ref : (TH+2, W2, Cin4)     H-halo-only scratch (all accesses aligned)
    # acc_ref: (TH*W2, Coutp) f32   accumulator scratch
    TH, W2, Cin = x_ref.shape
    Coutp = o_ref.shape[-1]
    M = TH * W2
    t = pl.program_id(1)
    nt = pl.num_programs(1)
    dt = x_ref.dtype

    # Assemble the H-halo window in VMEM; border rows are zero-filled via pl.when.
    xp_ref[1:TH + 1, :, :] = x_ref[...]

    @pl.when(t > 0)
    def _():
        xp_ref[0:1, :, :] = top_ref[...]

    @pl.when(t == 0)
    def _():
        xp_ref[0:1, :, :] = jnp.zeros((1, W2, Cin), dt)

    @pl.when(t < nt - 1)
    def _():
        xp_ref[TH + 1:TH + 2, :, :] = bot_ref[...]

    @pl.when(t == nt - 1)
    def _():
        xp_ref[TH + 1:TH + 2, :, :] = jnp.zeros((1, W2, Cin), dt)

    # Boundary-column masks for the rolled partial sums (hoisted out of the tap loop).
    col = lax.broadcasted_iota(jnp.int32, (TH, W2, Coutp), 1).reshape(M, Coutp)
    not_first_col = col > 0            # destination column 0 gets no kw=0 contribution
    not_last_col = col < (W2 - 1)      # destination column W2-1 gets no kw=2 contribution

    # 3 wide MXU matmuls (N = 3*Coutp); kw = +-1 placement via f32 sublane rolls.
    for kh in range(3):
        slab = xp_ref[kh:kh + TH, :, :].reshape(M, Cin)
        part = jnp.dot(slab, w_ref[kh], preferred_element_type=jnp.float32)
        p_kw0 = part[:, :Coutp]
        p_kw1 = part[:, Coutp:2 * Coutp]
        p_kw2 = part[:, 2 * Coutp:]
        contrib = (p_kw1
                   + jnp.where(not_first_col, pltpu.roll(p_kw0, 1, 0), 0.0)
                   + jnp.where(not_last_col, pltpu.roll(p_kw2, M - 1, 0), 0.0))
        if kh == 0:
            acc_ref[...] = contrib
        else:
            acc_ref[...] += contrib

    o_ref[...] = acc_ref[...].reshape(TH, W2, Coutp).astype(o_ref.dtype)


def downsample(x_nchw, weight, *, compute_dtype=jnp.bfloat16, out_dtype=None):
    """x_nchw: (N, C, H, W); weight: (C//2, C, 3, 3) PyTorch OIHW.
    Returns (N, 2*C, H//2, W//2), matching Conv2d(C, C//2, 3, pad=1) + PixelUnshuffle(2).

    Default compute_dtype=bfloat16 (MXU-native on v5e/v6e/v7x; f32 accumulation kept);
    pass compute_dtype=jnp.float32 for bit-accurate PyTorch/f32 numerics.
    """
    N, C, H, W = x_nchw.shape
    Co = weight.shape[0]
    assert weight.shape == (C // 2, C, 3, 3), weight.shape
    assert H % 2 == 0 and W % 2 == 0
    if out_dtype is None:
        out_dtype = x_nchw.dtype
    H2, W2 = H // 2, W // 2
    Cin4 = 4 * C
    Cout4 = 4 * Co                                     # == 2*C
    # Lane-pad output channels (real Restormer widths land near a 128 multiple).
    Coutp = _round_up(Cout4, 128) if Cout4 >= 64 else _round_up(Cout4, 8)

    # Space-to-depth(2) + NCHW->NHWC in one permutation; the bf16 cast fuses into it.
    xu = x_nchw.reshape(N, C, H2, 2, W2, 2)
    xu = jnp.transpose(xu, (0, 2, 4, 3, 5, 1)).reshape(N, H2, W2, Cin4)
    xu = xu.astype(compute_dtype)

    # Folded conv+unshuffle weights, laid out (kh, Cin4, kw*Coutp) so each kh is one
    # wide matmul (N = 3*Coutp) that fills the 256-wide MXU on v6e/v7x.
    w4 = _fold_weight(weight, Coutp)                         # (3, 3, Cin4, Coutp)
    w_rhs = jnp.transpose(w4, (0, 2, 1, 3)).reshape(3, Cin4, 3 * Coutp)
    w_rhs = w_rhs.astype(compute_dtype)

    # Generation-aware row tiling and scoped-VMEM limit.
    vmem_limit, vmem_budget = _vmem_limits()
    ib = jnp.dtype(compute_dtype).itemsize
    th_target = _pick_row_tile(H2, W2, Cin4, Coutp, ib, ib, vmem_budget)
    TH = _largest_divisor_leq(H2, th_target)
    if TH < max(1, th_target // 2):
        # Awkward H2: use a balanced tile and zero-pad H2 instead of degenerating to TH~1.
        nt = -(-H2 // th_target)
        TH = -(-H2 // nt)
        H2p = TH * nt
    else:
        H2p = H2
    if H2p != H2:
        xu = jnp.pad(xu, ((0, 0), (0, H2p - H2), (0, 0), (0, 0)))

    grid = (N, H2p // TH)

    y = pl.pallas_call(
        _conv_kernel,
        out_shape=jax.ShapeDtypeStruct((N, H2p, W2, Coutp), compute_dtype),
        grid_spec=pltpu.PrefetchScalarGridSpec(
            num_scalar_prefetch=0,
            grid=grid,
            in_specs=[
                pl.BlockSpec((None, TH, W2, Cin4), lambda n, t: (n, t, 0, 0)),
                pl.BlockSpec((None, 1, W2, Cin4),
                             lambda n, t: (n, jnp.maximum(t * TH - 1, 0), 0, 0)),
                pl.BlockSpec((None, 1, W2, Cin4),
                             lambda n, t: (n, jnp.minimum(t * TH + TH, H2p - 1), 0, 0)),
                pl.BlockSpec((3, Cin4, 3 * Coutp), lambda n, t: (0, 0, 0)),
            ],
            out_specs=pl.BlockSpec((None, TH, W2, Coutp), lambda n, t: (n, t, 0, 0)),
            scratch_shapes=[
                pltpu.VMEM((TH + 2, W2, Cin4), compute_dtype),
                pltpu.VMEM((TH * W2, Coutp), jnp.float32),
            ],
        ),
        compiler_params=pltpu.CompilerParams(
            dimension_semantics=("parallel", "parallel"),
            vmem_limit_bytes=vmem_limit,
        ),
    )(xu, xu, xu, w_rhs)

    # Channel order is already co*4 + dh*2 + dw (PixelUnshuffle order); strip the
    # H/channel padding and do the single unavoidable NHWC -> NCHW pass (cast fused).
    y = y[:, :H2, :, :Cout4]
    return jnp.transpose(y, (0, 3, 1, 2)).astype(out_dtype)   # (N, 2*C, H//2, W//2)


def downsample_ref(x_nchw, weight):
    """Pure-JAX reference for correctness checking."""
    y = lax.conv_general_dilated(
        x_nchw, weight, window_strides=(1, 1), padding=((1, 1), (1, 1)),
        dimension_numbers=("NCHW", "OIHW", "NCHW"))
    N, Cc, H, W = y.shape
    y = y.reshape(N, Cc, H // 2, 2, W // 2, 2)
    y = jnp.transpose(y, (0, 1, 3, 5, 2, 4))
    return y.reshape(N, Cc * 4, H // 2, W // 2)


if __name__ == "__main__":
    key = jax.random.PRNGKey(0)
    kx, kw = jax.random.split(key)

    N, C, H, W = 2, 4, 16, 16
    x = jax.random.normal(kx, (N, C, H, W), dtype=jnp.float32)
    # Deterministic synthetic conv weights (shape from nn.Conv2d(C, C//2, 3, bias=False)).
    weight = jax.random.normal(kw, (C // 2, C, 3, 3), dtype=jnp.float32) * 0.1

    ref = downsample_ref(x, weight)

    # f32 compute path: tight check against the conv+unshuffle reference.
    out_f32 = jax.block_until_ready(downsample(x, weight, compute_dtype=jnp.float32))
    assert out_f32.shape == (N, 2 * C, H // 2, W // 2), out_f32.shape
    err_f32 = float(jnp.max(jnp.abs(out_f32 - ref)))
    if err_f32 > 2e-4:
        raise AssertionError(f"f32 Pallas kernel mismatch vs reference, max_err={err_f32}")

    # Default bf16 compute path (MXU-native): looser tolerance for bf16 rounding.
    out_bf16 = jax.block_until_ready(downsample(x, weight))
    assert out_bf16.shape == (N, 2 * C, H // 2, W // 2), out_bf16.shape
    err_bf16 = float(jnp.max(jnp.abs(out_bf16 - ref)))
    if err_bf16 > 5e-2:
        raise AssertionError(f"bf16 Pallas kernel mismatch vs reference, max_err={err_bf16}")

    print("KERNEL_OK")
</pallas_src>

<mosaic_0001>
module attributes {stable_mosaic.version = 11 : i64} {
  func.func @_conv_kernel(%arg0: i32, %arg1: i32, %arg2: memref<1x8x8x16xf32, #tpu.memory_space<vmem>>, %arg3: memref<1x1x8x16xf32, #tpu.memory_space<vmem>>, %arg4: memref<1x1x8x16xf32, #tpu.memory_space<vmem>>, %arg5: memref<3x16x24xf32, #tpu.memory_space<vmem>>, %arg6: memref<1x8x8x8xf32, #tpu.memory_space<vmem>>, %arg7: memref<10x8x16xf32, #tpu.memory_space<vmem>>, %arg8: memref<64x8xf32, #tpu.memory_space<vmem>>) attributes {dimension_semantics = [#tpu.dimension_semantics<parallel>, #tpu.dimension_semantics<parallel>], iteration_bounds = array<i64: 2, 1>, scalar_prefetch = 0 : i64, scratch_operands = 2 : i64, tpu.core_type = #tpu.core_type<tc>, window_params = [{transform_indices = @transform_0, window_bounds = array<i64: 1, 8, 8, 16>}, {transform_indices = @transform_1, window_bounds = array<i64: 1, 1, 8, 16>}, {transform_indices = @transform_2, window_bounds = array<i64: 1, 1, 8, 16>}, {pipeline_mode = #tpu.pipeline_mode<synchronous>, transform_indices = @transform_3, window_bounds = array<i64: 3, 16, 24>}, {transform_indices = @transform_4, window_bounds = array<i64: 1, 8, 8, 8>}]} {
    %c0 = arith.constant 0 : index
    %c0_0 = arith.constant 0 : index
    %c0_1 = arith.constant 0 : index
    %c0_2 = arith.constant 0 : index
    %0 = vector.load %arg2[%c0, %c0_0, %c0_1, %c0_2] : memref<1x8x8x16xf32, #tpu.memory_space<vmem>>, vector<1x8x8x16xf32>
    %1 = vector.shape_cast %0 : vector<1x8x8x16xf32> to vector<8x8x16xf32>
    %c1 = arith.constant 1 : index
    %c0_3 = arith.constant 0 : index
    %c0_4 = arith.constant 0 : index
    %2 = vector.load %arg7[%c1, %c0_3, %c0_4] : memref<10x8x16xf32, #tpu.memory_space<vmem>>, vector<8x8x16xf32>
    tpu.vector_store %arg7[%c1, %c0_3, %c0_4], %1 {strides = array<i32>} : memref<10x8x16xf32, #tpu.memory_space<vmem>>, vector<8x8x16xf32>,
    %c0_i32 = arith.constant 0 : i32
    %3 = arith.cmpi sgt, %arg1, %c0_i32 : i32
    %4 = arith.extui %3 : i1 to i32
    %c0_i32_5 = arith.constant 0 : i32
    %5 = arith.cmpi ne, %4, %c0_i32_5 : i32
    scf.if %5 {
      %c0_58 = arith.constant 0 : index
      %c0_59 = arith.constant 0 : index
      %c0_60 = arith.constant 0 : index
      %c0_61 = arith.constant 0 : index
      %81 = vector.load %arg3[%c0_58, %c0_59, %c0_60, %c0_61] : memref<1x1x8x16xf32, #tpu.memory_space<vmem>>, vector<1x1x8x16xf32>
      %82 = vector.shape_cast %81 : vector<1x1x8x16xf32> to vector<1x8x16xf32>
      %c0_62 = arith.constant 0 : index
      %c0_63 = arith.constant 0 : index
      %c0_64 = arith.constant 0 : index
      %83 = vector.load %arg7[%c0_62, %c0_63, %c0_64] : memref<10x8x16xf32, #tpu.memory_space<vmem>>, vector<1x8x16xf32>
      tpu.vector_store %arg7[%c0_62, %c0_63, %c0_64], %82 {strides = array<i32>} : memref<10x8x16xf32, #tpu.memory_space<vmem>>, vector<1x8x16xf32>,
    } else {
    }
    %c0_i32_6 = arith.constant 0 : i32
    %6 = arith.cmpi eq, %arg1, %c0_i32_6 : i32
    %7 = arith.extui %6 : i1 to i32
    %c0_i32_7 = arith.constant 0 : i32
    %8 = arith.cmpi ne, %7, %c0_i32_7 : i32
    scf.if %8 {
      %cst_58 = arith.constant 0.000000e+00 : f32
      %81 = vector.broadcast %cst_58 : f32 to vector<1x8x16xf32>
      %c0_59 = arith.constant 0 : index
      %c0_60 = arith.constant 0 : index
      %c0_61 = arith.constant 0 : index
      %82 = vector.load %arg7[%c0_59, %c0_60, %c0_61] : memref<10x8x16xf32, #tpu.memory_space<vmem>>, vector<1x8x16xf32>
      tpu.vector_store %arg7[%c0_59, %c0_60, %c0_61], %81 {strides = array<i32>} : memref<10x8x16xf32, #tpu.memory_space<vmem>>, vector<1x8x16xf32>,
    } else {
    }
    %c0_i32_8 = arith.constant 0 : i32
    %9 = arith.cmpi slt, %arg1, %c0_i32_8 : i32
    %10 = arith.extui %9 : i1 to i32
    %c0_i32_9 = arith.constant 0 : i32
    %11 = arith.cmpi ne, %10, %c0_i32_9 : i32
    scf.if %11 {
      %c0_58 = arith.constant 0 : index
      %c0_59 = arith.constant 0 : index
      %c0_60 = arith.constant 0 : index
      %c0_61 = arith.constant 0 : index
      %81 = vector.load %arg4[%c0_58, %c0_59, %c0_60, %c0_61] : memref<1x1x8x16xf32, #tpu.memory_space<vmem>>, vector<1x1x8x16xf32>
      %82 = vector.shape_cast %81 : vector<1x1x8x16xf32> to vector<1x8x16xf32>
      %c9 = arith.constant 9 : index
      %c0_62 = arith.constant 0 : index
      %c0_63 = arith.constant 0 : index
      %83 = vector.load %arg7[%c9, %c0_62, %c0_63] : memref<10x8x16xf32, #tpu.memory_space<vmem>>, vector<1x8x16xf32>
      tpu.vector_store %arg7[%c9, %c0_62, %c0_63], %82 {strides = array<i32>} : memref<10x8x16xf32, #tpu.memory_space<vmem>>, vector<1x8x16xf32>,
    } else {
    }
    %c0_i32_10 = arith.constant 0 : i32
    %12 = arith.cmpi eq, %arg1, %c0_i32_10 : i32
    %13 = arith.extui %12 : i1 to i32
    %c0_i32_11 = arith.constant 0 : i32
    %14 = arith.cmpi ne, %13, %c0_i32_11 : i32
    scf.if %14 {
      %cst_58 = arith.constant 0.000000e+00 : f32
      %81 = vector.broadcast %cst_58 : f32 to vector<1x8x16xf32>
      %c9 = arith.constant 9 : index
      %c0_59 = arith.constant 0 : index
      %c0_60 = arith.constant 0 : index
      %82 = vector.load %arg7[%c9, %c0_59, %c0_60] : memref<10x8x16xf32, #tpu.memory_space<vmem>>, vector<1x8x16xf32>
      tpu.vector_store %arg7[%c9, %c0_59, %c0_60], %81 {strides = array<i32>} : memref<10x8x16xf32, #tpu.memory_space<vmem>>, vector<1x8x16xf32>,
    } else {
    }
    %15 = tpu.iota {dimensions = array<i32: 1>} : vector<8x8x8xi32>
    %16 = vector.shape_cast %15 : vector<8x8x8xi32> to vector<64x8xi32>
    %c0_i32_12 = arith.constant 0 : i32
    %17 = vector.broadcast %c0_i32_12 : i32 to vector<64x8xi32>
    %18 = arith.cmpi sgt, %16, %17 : vector<64x8xi32>
    %c7_i32 = arith.constant 7 : i32
    %19 = vector.broadcast %c7_i32 : i32 to vector<64x8xi32>
    %20 = arith.cmpi slt, %16, %19 : vector<64x8xi32>
    %c0_13 = arith.constant 0 : index
    %c0_14 = arith.constant 0 : index
    %c0_15 = arith.constant 0 : index
    %21 = vector.load %arg7[%c0_13, %c0_14, %c0_15] : memref<10x8x16xf32, #tpu.memory_space<vmem>>, vector<8x8x16xf32>
    %22 = vector.shape_cast %21 : vector<8x8x16xf32> to vector<64x16xf32>
    %c0_16 = arith.constant 0 : index
    %c0_17 = arith.constant 0 : index
    %c0_18 = arith.constant 0 : index
    %23 = vector.load %arg5[%c0_16, %c0_17, %c0_18] : memref<3x16x24xf32, #tpu.memory_space<vmem>>, vector<1x16x24xf32>
    %24 = vector.shape_cast %23 : vector<1x16x24xf32> to vector<16x24xf32>
    %cst = arith.constant dense<0.000000e+00> : vector<64x24xf32>
    %25 = tpu.matmul %22, %24, %cst {dimension_numbers = #tpu.dot_dimension_numbers<[1], [0], [0], [1], [0, 0, 1, 1], [], []>} : vector<64x16xf32>, vector<16x24xf32>, vector<64x24xf32> -> vector<64x24xf32>
    %26 = vector.extract_strided_slice %25 {offsets = [0, 0], sizes = [64, 8], strides = [1, 1]} : vector<64x24xf32> to vector<64x8xf32>
    %27 = vector.extract_strided_slice %25 {offsets = [0, 8], sizes = [64, 8], strides = [1, 1]} : vector<64x24xf32> to vector<64x8xf32>
    %28 = vector.extract_strided_slice %25 {offsets = [0, 16], sizes = [64, 8], strides = [1, 1]} : vector<64x24xf32> to vector<64x8xf32>
    %c1_i32 = arith.constant 1 : i32
    %29 = tpu.dynamic_rotate %26 by %c1_i32 dim 0 : vector<64x8xf32>, i32 -> vector<64x8xf32>
    %cst_19 = arith.constant 0.000000e+00 : f32
    %30 = vector.broadcast %cst_19 : f32 to vector<64x8xf32>
    %31 = arith.select %18, %29, %30 : vector<64x8xi1>, vector<64x8xf32>
    %32 = arith.addf %27, %31 : vector<64x8xf32>
    %c63_i32 = arith.constant 63 : i32
    %33 = tpu.dynamic_rotate %28 by %c63_i32 dim 0 : vector<64x8xf32>, i32 -> vector<64x8xf32>
    %cst_20 = arith.constant 0.000000e+00 : f32
    %34 = vector.broadcast %cst_20 : f32 to vector<64x8xf32>
    %35 = arith.select %20, %33, %34 : vector<64x8xi1>, vector<64x8xf32>
    %36 = arith.addf %32, %35 : vector<64x8xf32>
    %c0_21 = arith.constant 0 : index
    %c0_22 = arith.constant 0 : index
    %37 = vector.load %arg8[%c0_21, %c0_22] : memref<64x8xf32, #tpu.memory_space<vmem>>, vector<64x8xf32>
    tpu.vector_store %arg8[%c0_21, %c0_22], %36 {strides = array<i32>} : memref<64x8xf32, #tpu.memory_space<vmem>>, vector<64x8xf32>,
    %c1_23 = arith.constant 1 : index
    %c0_24 = arith.constant 0 : index
    %c0_25 = arith.constant 0 : index
    %38 = vector.load %arg7[%c1_23, %c0_24, %c0_25] : memref<10x8x16xf32, #tpu.memory_space<vmem>>, vector<8x8x16xf32>
    %39 = vector.shape_cast %38 : vector<8x8x16xf32> to vector<64x16xf32>
    %c1_26 = arith.constant 1 : index
    %c0_27 = arith.constant 0 : index
    %c0_28 = arith.constant 0 : index
    %40 = vector.load %arg5[%c1_26, %c0_27, %c0_28] : memref<3x16x24xf32, #tpu.memory_space<vmem>>, vector<1x16x24xf32>
    %41 = vector.shape_cast %40 : vector<1x16x24xf32> to vector<16x24xf32>
    %cst_29 = arith.constant dense<0.000000e+00> : vector<64x24xf32>
    %42 = tpu.matmul %39, %41, %cst_29 {dimension_numbers = #tpu.dot_dimension_numbers<[1], [0], [0], [1], [0, 0, 1, 1], [], []>} : vector<64x16xf32>, vector<16x24xf32>, vector<64x24xf32> -> vector<64x24xf32>
    %43 = vector.extract_strided_slice %42 {offsets = [0, 0], sizes = [64, 8], strides = [1, 1]} : vector<64x24xf32> to vector<64x8xf32>
    %44 = vector.extract_strided_slice %42 {offsets = [0, 8], sizes = [64, 8], strides = [1, 1]} : vector<64x24xf32> to vector<64x8xf32>
    %45 = vector.extract_strided_slice %42 {offsets = [0, 16], sizes = [64, 8], strides = [1, 1]} : vector<64x24xf32> to vector<64x8xf32>
    %c1_i32_30 = arith.constant 1 : i32
    %46 = tpu.dynamic_rotate %43 by %c1_i32_30 dim 0 : vector<64x8xf32>, i32 -> vector<64x8xf32>
    %cst_31 = arith.constant 0.000000e+00 : f32
    %47 = vector.broadcast %cst_31 : f32 to vector<64x8xf32>
    %48 = arith.select %18, %46, %47 : vector<64x8xi1>, vector<64x8xf32>
    %49 = arith.addf %44, %48 : vector<64x8xf32>
    %c63_i32_32 = arith.constant 63 : i32
    %50 = tpu.dynamic_rotate %45 by %c63_i32_32 dim 0 : vector<64x8xf32>, i32 -> vector<64x8xf32>
    %cst_33 = arith.constant 0.000000e+00 : f32
    %51 = vector.broadcast %cst_33 : f32 to vector<64x8xf32>
    %52 = arith.select %20, %50, %51 : vector<64x8xi1>, vector<64x8xf32>
    %53 = arith.addf %49, %52 : vector<64x8xf32>
    %c0_34 = arith.constant 0 : index
    %c0_35 = arith.constant 0 : index
    %54 = vector.load %arg8[%c0_34, %c0_35] : memref<64x8xf32, #tpu.memory_space<vmem>>, vector<64x8xf32>
    %55 = arith.addf %54, %53 : vector<64x8xf32>
    %c0_36 = arith.constant 0 : index
    %c0_37 = arith.constant 0 : index
    %56 = vector.load %arg8[%c0_36, %c0_37] : memref<64x8xf32, #tpu.memory_space<vmem>>, vector<64x8xf32>
    tpu.vector_store %arg8[%c0_36, %c0_37], %55 {strides = array<i32>} : memref<64x8xf32, #tpu.memory_space<vmem>>, vector<64x8xf32>,
    %c2 = arith.constant 2 : index
    %c0_38 = arith.constant 0 : index
    %c0_39 = arith.constant 0 : index
    %57 = vector.load %arg7[%c2, %c0_38, %c0_39] : memref<10x8x16xf32, #tpu.memory_space<vmem>>, vector<8x8x16xf32>
    %58 = vector.shape_cast %57 : vector<8x8x16xf32> to vector<64x16xf32>
    %c2_40 = arith.constant 2 : index
    %c0_41 = arith.constant 0 : index
    %c0_42 = arith.constant 0 : index
    %59 = vector.load %arg5[%c2_40, %c0_41, %c0_42] : memref<3x16x24xf32, #tpu.memory_space<vmem>>, vector<1x16x24xf32>
    %60 = vector.shape_cast %59 : vector<1x16x24xf32> to vector<16x24xf32>
    %cst_43 = arith.constant dense<0.000000e+00> : vector<64x24xf32>
    %61 = tpu.matmul %58, %60, %cst_43 {dimension_numbers = #tpu.dot_dimension_numbers<[1], [0], [0], [1], [0, 0, 1, 1], [], []>} : vector<64x16xf32>, vector<16x24xf32>, vector<64x24xf32> -> vector<64x24xf32>
    %62 = vector.extract_strided_slice %61 {offsets = [0, 0], sizes = [64, 8], strides = [1, 1]} : vector<64x24xf32> to vector<64x8xf32>
    %63 = vector.extract_strided_slice %61 {offsets = [0, 8], sizes = [64, 8], strides = [1, 1]} : vector<64x24xf32> to vector<64x8xf32>
    %64 = vector.extract_strided_slice %61 {offsets = [0, 16], sizes = [64, 8], strides = [1, 1]} : vector<64x24xf32> to vector<64x8xf32>
    %c1_i32_44 = arith.constant 1 : i32
    %65 = tpu.dynamic_rotate %62 by %c1_i32_44 dim 0 : vector<64x8xf32>, i32 -> vector<64x8xf32>
    %cst_45 = arith.constant 0.000000e+00 : f32
    %66 = vector.broadcast %cst_45 : f32 to vector<64x8xf32>
    %67 = arith.select %18, %65, %66 : vector<64x8xi1>, vector<64x8xf32>
    %68 = arith.addf %63, %67 : vector<64x8xf32>
    %c63_i32_46 = arith.constant 63 : i32
    %69 = tpu.dynamic_rotate %64 by %c63_i32_46 dim 0 : vector<64x8xf32>, i32 -> vector<64x8xf32>
    %cst_47 = arith.constant 0.000000e+00 : f32
    %70 = vector.broadcast %cst_47 : f32 to vector<64x8xf32>
    %71 = arith.select %20, %69, %70 : vector<64x8xi1>, vector<64x8xf32>
    %72 = arith.addf %68, %71 : vector<64x8xf32>
    %c0_48 = arith.constant 0 : index
    %c0_49 = arith.constant 0 : index
    %73 = vector.load %arg8[%c0_48, %c0_49] : memref<64x8xf32, #tpu.memory_space<vmem>>, vector<64x8xf32>
    %74 = arith.addf %73, %72 : vector<64x8xf32>
    %c0_50 = arith.constant 0 : index
    %c0_51 = arith.constant 0 : index
    %75 = vector.load %arg8[%c0_50, %c0_51] : memref<64x8xf32, #tpu.memory_space<vmem>>, vector<64x8xf32>
    tpu.vector_store %arg8[%c0_50, %c0_51], %74 {strides = array<i32>} : memref<64x8xf32, #tpu.memory_space<vmem>>, vector<64x8xf32>,
    %c0_52 = arith.constant 0 : index
    %c0_53 = arith.constant 0 : index
    %76 = vector.load %arg8[%c0_52, %c0_53] : memref<64x8xf32, #tpu.memory_space<vmem>>, vector<64x8xf32>
    %77 = vector.shape_cast %76 : vector<64x8xf32> to vector<8x8x8xf32>
    %c0_54 = arith.constant 0 : index
    %c0_55 = arith.constant 0 : index
    %c0_56 = arith.constant 0 : index
    %c0_57 = arith.constant 0 : index
    %78 = vector.load %arg6[%c0_54, %c0_55, %c0_56, %c0_57] : memref<1x8x8x8xf32, #tpu.memory_space<vmem>>, vector<1x8x8x8xf32>
    %79 = vector.shape_cast %78 : vector<1x8x8x8xf32> to vector<8x8x8xf32>
    %80 = vector.shape_cast %77 : vector<8x8x8xf32> to vector<1x8x8x8xf32>
    tpu.vector_store %arg6[%c0_54, %c0_55, %c0_56, %c0_57], %80 {strides = array<i32>} : memref<1x8x8x8xf32, #tpu.memory_space<vmem>>, vector<1x8x8x8xf32>,
    return
  }
  func.func @transform_0(%arg0: i32, %arg1: i32) -> (i32, i32, i32, i32) {
    %c0_i32 = arith.constant 0 : i32
    %c0_i32_0 = arith.constant 0 : i32
    %c0_i32_1 = arith.constant 0 : i32
    return %arg0, %arg1, %c0_i32, %c0_i32_0 : i32, i32, i32, i32
  }
  func.func @transform_1(%arg0: i32, %arg1: i32) -> (i32, i32, i32, i32) {
    %c8_i32 = arith.constant 8 : i32
    %0 = arith.muli %arg1, %c8_i32 : i32
    %c1_i32 = arith.constant 1 : i32
    %1 = arith.subi %0, %c1_i32 : i32
    %c0_i32 = arith.constant 0 : i32
    %2 = arith.maxsi %1, %c0_i32 : i32
    %c0_i32_0 = arith.constant 0 : i32
    %c0_i32_1 = arith.constant 0 : i32
    %c0_i32_2 = arith.constant 0 : i32
    return %arg0, %2, %c0_i32_0, %c0_i32_1 : i32, i32, i32, i32
  }
  func.func @transform_2(%arg0: i32, %arg1: i32) -> (i32, i32, i32, i32) {
    %c8_i32 = arith.constant 8 : i32
    %0 = arith.muli %arg1, %c8_i32 : i32
    %c8_i32_0 = arith.constant 8 : i32
    %1 = arith.addi %0, %c8_i32_0 : i32
    %c7_i32 = arith.constant 7 : i32
    %2 = arith.minsi %1, %c7_i32 : i32
    %c0_i32 = arith.constant 0 : i32
    %c0_i32_1 = arith.constant 0 : i32
    %c0_i32_2 = arith.constant 0 : i32
    return %arg0, %2, %c0_i32, %c0_i32_1 : i32, i32, i32, i32
  }
  func.func @transform_3(%arg0: i32, %arg1: i32) -> (i32, i32, i32) {
    %c0_i32 = arith.constant 0 : i32
    %c0_i32_0 = arith.constant 0 : i32
    %c0_i32_1 = arith.constant 0 : i32
    %c0_i32_2 = arith.constant 0 : i32
    return %c0_i32, %c0_i32_0, %c0_i32_1 : i32, i32, i32
  }
  func.func @transform_4(%arg0: i32, %arg1: i32) -> (i32, i32, i32, i32) {
    %c0_i32 = arith.constant 0 : i32
    %c0_i32_0 = arith.constant 0 : i32
    %c0_i32_1 = arith.constant 0 : i32
    return %arg0, %arg1, %c0_i32, %c0_i32_0 : i32, i32, i32, i32
  }
}

</mosaic_0001>

<llo_original>
// kernel: tpu_custom_call.1
$region0: #{tpu_custom_call.1}
  #allocation0 [shape = 'u32[]', space=smem, size = 0x4, offset = 0x4, fixed_abs, tag = 'smem constant byte address 0x4 - core index']
  #allocation1 [shape = 'u32[72,128]{1,0:T(1,128)}', space=vmem, size = 0x9000, scoped, tag = 'internal scratch']
  #allocation2 [shape = 'f32[10,8,16]{2,1,0:T(8,128)}', space=vmem, size = 0xa000, scoped, tag = 'scratch operand']
  #allocation3 [shape = 'f32[64,8]{1,0:T(8,128)}', space=vmem, size = 0x8000, scoped, tag = 'scratch operand']
  %s0 = inlined_call_operand.hbm [shape: f32[2,8,8,16], index: 0, kind: input, shape index: {}]
  %s1 = inlined_call_operand.hbm [shape: f32[2,8,8,16], index: 1, kind: input, shape index: {}]
  %s2 = inlined_call_operand.hbm [shape: f32[2,8,8,16], index: 2, kind: input, shape index: {}]
  %s3 = inlined_call_operand.hbm [shape: f32[3,16,24], index: 3, kind: input, shape index: {}]
  %s4 = inlined_call_operand.hbm [shape: f32[2,8,8,8], index: 4, kind: output, shape index: {}]
  %s5 = sld [smem:[#allocation0]]
  $region81: #{tpu_custom_call.1} parent=0
    _
  %s7 = ssub.s32 1, %s5
  %s8 = scalar_select 0, %s7, %s5
  $region1: #{tpu_custom_call.1} parent=0
    #allocation4 [shape = 'u8[65536]{0}', space=vmem, size = 0x10000, scoped, tag = 'input window, operand 0']
    #allocation5 [shape = 's32[2]{0}', space=sflag, size = 0x8, scoped, tag = 'scoped memory for tpu_custom_call.1']
    #allocation6 [shape = 's32[2]{0}', space=sflag, size = 0x8, scoped, tag = 'scoped memory for tpu_custom_call.1']
    #allocation7 [shape = 'u8[8192]{0}', space=vmem, size = 0x2000, scoped, tag = 'input window, operand 1']
    #allocation8 [shape = 's32[2]{0}', space=sflag, size = 0x8, scoped, tag = 'scoped memory for tpu_custom_call.1']
    #allocation9 [shape = 'u8[8192]{0}', space=vmem, size = 0x2000, scoped, tag = 'input window, operand 2']
    #allocation10 [shape = 'u8[24576]{0}', space=vmem, size = 0x6000, scoped, tag = 'input window, operand 3, single buffered']
    #allocation11 [shape = 's32[1]{0}', space=sflag, size = 0x4, scoped, tag = 'scoped memory for tpu_custom_call.1']
    #allocation12 [shape = 'u8[65536]{0}', space=vmem, size = 0x10000, scoped, tag = 'output window, operand 0']
    %9 = vsyncpa [#allocation5], 0
    %s10 = scalar_lea.sflag [#allocation5], 1
    %11 = vsyncpa %s10, 0
    %12 = vsyncpa [#allocation8], 0
    %s13 = scalar_lea.sflag [#allocation8], 1
    %14 = vsyncpa %s13, 0
    %15 = vsyncpa [#allocation11], 0
    %16 = vsyncpa [#allocation6], 0
    %s17 = scalar_lea.sflag [#allocation6], 1
    %18 = vsyncpa %s17, 0
    loop: start=0, step=1, limit=4
    $region2: #{tpu_custom_call.1} parent=1 // loop_pre_header
      _
    $region3: #{tpu_custom_call.1} parent=1 // loop_header
      %s20 = sphi 0, %s24
      %p21 = scmp.ge.s32.totalorder %s20, 4
      %s27 = sphi 0, %s39
      %s28 = sphi 0, %s35
      %s29 = sphi 0, %s27
      %s30 = sphi 0, %s28
      %s31 = sphi 0, %s29
      %s32 = sphi 0, %s30
      %s44 = sphi 0, %s46
      %s47 = sphi 0, %s44
      %s48 = sphi 0, %s47
      %s64 = sphi 0, %s48
      %s80 = sphi 0, %s82
      %s83 = sphi 0, %s80
      %s84 = sphi 0, %s83
      %s100 = sphi 0, %s84
      %s116 = sphi 0, %s118
      %s119 = sphi 0, %s116
      %s120 = sphi 0, %s119
      %s136 = sphi 0, %s120
      %s140 = sphi 0, %s140
      %s142 = sphi 0, %s140
      %s143 = sphi 0, %s142
      %s157 = sphi 0, %s143
      %s165 = sphi 0, %s167
      %s168 = sphi 0, %s165
      %s169 = sphi 0, %s168
      %s185 = sphi 0, %s169
    $region4: #{tpu_custom_call.1} parent=1 // loop_header_branch
      %23 = sbr.rel (%p21) target = $region8
    $region5: #{tpu_custom_call.1} parent=1 // loop_body
      %s25 = ssub.s32 %s20, 1
      %s26 = ssub.s32 %s20, 2
      %s33 = sadd.s32 1, %s28
      %p34 = scmp.ge.s32.totalorder %s33, 1
      %s35 = scalar_select %p34, 0, %s33
      %s36 = sadd.s32 1, %s27
      %s37 = scalar_select %p34, %s36, %s27
      %p38 = scmp.ge.s32.totalorder %s37, 2
      %s39 = scalar_select %p38, 0, %s37
      %s40 = ssub.s32 %s27, %s39
      %s41 = ssub.s32 %s28, %s35
      %s42 = sor.u32 %s40, %s41
      %p43 = scmp.eq.s32.totalorder %s42, 0
      %s45 = sadd.s32 %s44, 1
      %s46 = scalar_select %p43, %s44, %s45
      %p49 = pneg %p43
      %p50 = scmp.eq.s32.totalorder %s20, 1
      %p51 = por %p49, %p50
      %p52 = scmp.ne.s32.totalorder %s44, %s47
      %p53 = scmp.eq.s32.totalorder %s20, 0
      %p54 = por %p52, %p53
      %p55 = scmp.ne.s32.totalorder %s44, %s47
      %p56 = scmp.eq.s32.totalorder %s25, 1
      %p57 = por %p55, %p56
      %p58 = scmp.ne.s32.totalorder %s47, %s48
      %p59 = scmp.eq.s32.totalorder %s25, 0
      %p60 = por %p58, %p59
      %p61 = scmp.ne.s32.totalorder %s47, %s48
      %p62 = scmp.eq.s32.totalorder %s26, 1
      %p63 = por %p61, %p62
      %p65 = scmp.ne.s32.totalorder %s48, %s64
      %p66 = scmp.eq.s32.totalorder %s26, 0
      %p67 = por %p65, %p66
      %s68 = smul.u32 %s28, 8
      %s69 = ssub.s32 %s68, 1
      %p70 = scmp.gt.s32.totalorder %s69, 0
      %s71 = scalar_select %p70, %s69, 0
      %s72 = smul.u32 %s35, 8
      %s73 = ssub.s32 %s72, 1
      %p74 = scmp.gt.s32.totalorder %s73, 0
      %s75 = scalar_select %p74, %s73, 0
      %s76 = ssub.s32 %s27, %s39
      %s77 = ssub.s32 %s71, %s75
      %s78 = sor.u32 %s76, %s77
      %p79 = scmp.eq.s32.totalorder %s78, 0
      %s81 = sadd.s32 %s80, 1
      %s82 = scalar_select %p79, %s80, %s81
      %p85 = pneg %p79
      %p86 = scmp.eq.s32.totalorder %s20, 1
      %p87 = por %p85, %p86
      %p88 = scmp.ne.s32.totalorder %s80, %s83
      %p89 = scmp.eq.s32.totalorder %s20, 0
      %p90 = por %p88, %p89
      %p91 = scmp.ne.s32.totalorder %s80, %s83
      %p92 = scmp.eq.s32.totalorder %s25, 1
      %p93 = por %p91, %p92
      %p94 = scmp.ne.s32.totalorder %s83, %s84
      %p95 = scmp.eq.s32.totalorder %s25, 0
      %p96 = por %p94, %p95
      %p97 = scmp.ne.s32.totalorder %s83, %s84
      %p98 = scmp.eq.s32.totalorder %s26, 1
      %p99 = por %p97, %p98
      %p101 = scmp.ne.s32.totalorder %s84, %s100
      %p102 = scmp.eq.s32.totalorder %s26, 0
      %p103 = por %p101, %p102
      %s104 = smul.u32 %s28, 8
      %s105 = sadd.s32 %s104, 8
      %p106 = scmp.lt.s32.totalorder %s105, 7
      %s107 = scalar_select %p106, %s105, 7
      %s108 = smul.u32 %s35, 8
      %s109 = sadd.s32 %s108, 8
      %p110 = scmp.lt.s32.totalorder %s109, 7
      %s111 = scalar_select %p110, %s109, 7
      %s112 = ssub.s32 %s27, %s39
      %s113 = ssub.s32 %s107, %s111
      %s114 = sor.u32 %s112, %s113
      %p115 = scmp.eq.s32.totalorder %s114, 0
      %s117 = sadd.s32 %s116, 1
      %s118 = scalar_select %p115, %s116, %s117
      %p121 = pneg %p115
      %p122 = scmp.eq.s32.totalorder %s20, 1
      %p123 = por %p121, %p122
      %p124 = scmp.ne.s32.totalorder %s116, %s119
      %p125 = scmp.eq.s32.totalorder %s20, 0
      %p126 = por %p124, %p125
      %p127 = scmp.ne.s32.totalorder %s116, %s119
      %p128 = scmp.eq.s32.totalorder %s25, 1
      %p129 = por %p127, %p128
      %p130 = scmp.ne.s32.totalorder %s119, %s120
      %p131 = scmp.eq.s32.totalorder %s25, 0
      %p132 = por %p130, %p131
      %p133 = scmp.ne.s32.totalorder %s119, %s120
      %p134 = scmp.eq.s32.totalorder %s26, 1
      %p135 = por %p133, %p134
      %p137 = scmp.ne.s32.totalorder %s120, %s136
      %p138 = scmp.eq.s32.totalorder %s26, 0
      %p139 = por %p137, %p138
      %s141 = sadd.s32 %s140, 1
      %p144 = scmp.eq.s32.totalorder %s20, 1
      %p145 = scmp.ne.s32.totalorder %s140, %s142
      %p146 = scmp.eq.s32.totalorder %s20, 0
      %p147 = por %p145, %p146
      %p148 = scmp.ne.s32.totalorder %s140, %s142
      %p149 = scmp.eq.s32.totalorder %s25, 1
      %p150 = por %p148, %p149
      %p151 = scmp.ne.s32.totalorder %s142, %s143
      %p152 = scmp.eq.s32.totalorder %s25, 0
      %p153 = por %p151, %p152
      %p154 = scmp.ne.s32.totalorder %s142, %s143
      %p155 = scmp.eq.s32.totalorder %s26, 1
      %p156 = por %p154, %p155
      %p158 = scmp.ne.s32.totalorder %s143, %s157
      %p159 = scmp.eq.s32.totalorder %s26, 0
      %p160 = por %p158, %p159
      %s161 = ssub.s32 %s27, %s39
      %s162 = ssub.s32 %s28, %s35
      %s163 = sor.u32 %s161, %s162
      %p164 = scmp.eq.s32.totalorder %s163, 0
      %s166 = sadd.s32 %s165, 1
      %s167 = scalar_select %p164, %s165, %s166
      %p170 = pneg %p164
      %p171 = scmp.eq.s32.totalorder %s20, 1
      %p172 = por %p170, %p171
      %p173 = scmp.ne.s32.totalorder %s165, %s168
      %p174 = scmp.eq.s32.totalorder %s20, 0
      %p175 = por %p173, %p174
      %p176 = scmp.ne.s32.totalorder %s165, %s168
      %p177 = scmp.eq.s32.totalorder %s25, 1
      %p178 = por %p176, %p177
      %p179 = scmp.ne.s32.totalorder %s168, %s169
      %p180 = scmp.eq.s32.totalorder %s25, 0
      %p181 = por %p179, %p180
      %p182 = scmp.ne.s32.totalorder %s168, %s169
      %p183 = scmp.eq.s32.totalorder %s26, 1
      %p184 = por %p182, %p183
      %p186 = scmp.ne.s32.totalorder %s169, %s185
      %p187 = scmp.eq.s32.totalorder %s26, 0
      %p188 = por %p186, %p187
      %p189 = scmp.le.s32.totalorder 1, %s20
      %p190 = scmp.lt.s32.totalorder %s20, 3
      %p191 = pnand %p189, %p190
      %p192 = pneg %p191
      // Predicated region
      $region9: #{tpu_custom_call.1} parent=5 // pred_check
        _
      $region10: #{tpu_custom_call.1} parent=5 // pred_check_branch
        %194 = sbr.rel (%p191) target = $region12
      $region11: #{tpu_custom_call.1} parent=5 // pred_region
        %s195 = ssub.s32 %s20, 1
        // Predicated region
        $region13: #{tpu_custom_call.1} parent=11 // pred_check
          %p196 = pneg %p153
        $region14: #{tpu_custom_call.1} parent=11 // pred_check_branch
          %198 = sbr.rel (%p196) target = $region16
        $region15: #{tpu_custom_call.1} parent=11 // pred_region
          %200 = vsyncadd [#allocation11], 0
          %s201 = sshll.u32 %s3, 4
          %s202 = int_to_ptr.hbm [resolvable:$true] %s201
          %s203 = sshll.u32 [#allocation10], 4
          %s204 = int_to_ptr.vmem [resolvable:$true] %s203
          %209 = dma.hbm_to_vmem [thread:$0]  %s202, 768, %s204, [#allocation11], 128, 128, 8
        $region16: #{tpu_custom_call.1} parent=11 // pred_fallthru
          _
      $region12: #{tpu_custom_call.1} parent=5 // pred_fallthru
        _
      %p210 = scmp.lt.s32.totalorder %s20, 2
      // Predicated region
      $region17: #{tpu_custom_call.1} parent=5 // pred_check
        %p211 = pneg %p210
      $region18: #{tpu_custom_call.1} parent=5 // pred_check_branch
        %213 = sbr.rel (%p211) target = $region20
      $region19: #{tpu_custom_call.1} parent=5 // pred_region
        // Predicated region
        $region21: #{tpu_custom_call.1} parent=19 // pred_check
          %p214 = pneg %p54
        $region22: #{tpu_custom_call.1} parent=19 // pred_check_branch
          %216 = sbr.rel (%p214) target = $region24
        $region23: #{tpu_custom_call.1} parent=19 // pred_region
          %s217 = sand.u32 %s44, 1
          %s218 = scalar_lea.sflag [#allocation5], %s217
          %s219 = sand.u32 %s44, 1
          %s220 = smul.addr %s219, 64
          %s221 = scalar_lea.vmem [#allocation4], %s220
          %s222 = smul.u32 8, %s28
          %224 = vsyncadd %s218, 0
          %s225 = smul.addr %s27, 8
          %s226 = sadd.s32 %s222, %s225
          %s227 = smul.addr %s226, 8
          %s228 = scalar_lea.hbm %s0, %s227
          %s229 = sshll.u32 %s228, 4
          %s230 = int_to_ptr.hbm [resolvable:$true] %s229
          %s231 = sshll.u32 %s221, 4
          %s232 = int_to_ptr.vmem [resolvable:$true] %s231
          %237 = dma.hbm_to_vmem [thread:$0]  %s230, 1024, %s232, %s218, 128, 128, 8
        $region24: #{tpu_custom_call.1} parent=19 // pred_fallthru
          _
        // Predicated region
        $region25: #{tpu_custom_call.1} parent=19 // pred_check
          %p238 = pneg %p90
        $region26: #{tpu_custom_call.1} parent=19 // pred_check_branch
          %240 = sbr.rel (%p238) target = $region28
        $region27: #{tpu_custom_call.1} parent=19 // pred_region
          %s241 = sand.u32 %s20, 1
          %s242 = scalar_lea.sflag [#allocation8], %s241
          %s243 = sand.u32 %s80, 1
          %s244 = smul.addr %s243, 8
          %s245 = scalar_lea.vmem [#allocation7], %s244
          %s246 = smul.u32 %s28, 8
          %s247 = ssub.s32 %s246, 1
          %p248 = scmp.gt.s32.totalorder %s247, 0
          %s249 = scalar_select %p248, %s247, 0
          %251 = vsyncadd %s242, 0
          %s252 = smul.addr %s27, 8
          %s253 = sadd.s32 %s249, %s252
          %s254 = smul.addr %s253, 8
          %s255 = scalar_lea.hbm %s1, %s254
          %s257 = sshll.u32 %s255, 4
          %s258 = int_to_ptr.hbm [resolvable:$true] %s257
          %s259 = sshll.u32 %s245, 4
          %s260 = int_to_ptr.vmem [resolvable:$true] %s259
          %262 = dma.hbm_to_vmem [thread:$0]  %s258, 128, %s260, %s242
        $region28: #{tpu_custom_call.1} parent=19 // pred_fallthru
          _
        // Predicated region
        $region29: #{tpu_custom_call.1} parent=19 // pred_check
          %p263 = pneg %p126
        $region30: #{tpu_custom_call.1} parent=19 // pred_check_branch
          %265 = sbr.rel (%p263) target = $region32
        $region31: #{tpu_custom_call.1} parent=19 // pred_region
          %s266 = sand.u32 %s20, 1
          %s267 = scalar_lea.sflag [#allocation8], %s266
          %s268 = sand.u32 %s116, 1
          %s269 = smul.addr %s268, 8
          %s270 = scalar_lea.vmem [#allocation9], %s269
          %s271 = smul.u32 %s28, 8
          %s272 = sadd.s32 %s271, 8
          %p273 = scmp.lt.s32.totalorder %s272, 7
          %s274 = scalar_select %p273, %s272, 7
          %276 = vsyncadd %s267, 0
          %s277 = smul.addr %s27, 8
          %s278 = sadd.s32 %s274, %s277
          %s279 = smul.addr %s278, 8
          %s280 = scalar_lea.hbm %s2, %s279
          %s282 = sshll.u32 %s280, 4
          %s283 = int_to_ptr.hbm [resolvable:$true] %s282
          %s284 = sshll.u32 %s270, 4
          %s285 = int_to_ptr.vmem [resolvable:$true] %s284
          %287 = dma.hbm_to_vmem [thread:$0]  %s283, 128, %s285, %s267
        $region32: #{tpu_custom_call.1} parent=19 // pred_fallthru
          _
      $region20: #{tpu_custom_call.1} parent=5 // pred_fallthru
        _
      %p288 = scmp.le.s32.totalorder 1, %s20
      %p289 = scmp.lt.s32.totalorder %s20, 3
      %p290 = pnand %p288, %p289
      %p291 = pneg %p290
      // Predicated region
      $region33: #{tpu_custom_call.1} parent=5 // pred_check
        _
      $region34: #{tpu_custom_call.1} parent=5 // pred_check_branch
        %293 = sbr.rel (%p290) target = $region36
      $region35: #{tpu_custom_call.1} parent=5 // pred_region
        %s294 = ssub.s32 %s20, 1
        %s295 = sand.u32 %s47, 1
        %s296 = scalar_lea.sflag [#allocation5], %s295
        %s297 = sand.u32 %s47, 1
        %s298 = smul.addr %s297, 64
        %s299 = scalar_lea.vmem [#allocation4], %s298
        // Predicated region
        $region37: #{tpu_custom_call.1} parent=35 // pred_check
          %p300 = pneg %p60
        $region38: #{tpu_custom_call.1} parent=35 // pred_check_branch
          %302 = sbr.rel (%p300) target = $region40
        $region39: #{tpu_custom_call.1} parent=35 // pred_region
          %304 = dma.done %s296, 1024
        $region40: #{tpu_custom_call.1} parent=35 // pred_fallthru
          _
        %s305 = sand.u32 %s25, 1
        %s306 = scalar_lea.sflag [#allocation8], %s305
        %s307 = sand.u32 %s83, 1
        %s308 = smul.addr %s307, 8
        %s309 = scalar_lea.vmem [#allocation7], %s308
        // Predicated region
        $region41: #{tpu_custom_call.1} parent=35 // pred_check
          %p310 = pneg %p96
        $region42: #{tpu_custom_call.1} parent=35 // pred_check_branch
          %312 = sbr.rel (%p310) target = $region44
        $region43: #{tpu_custom_call.1} parent=35 // pred_region
          %314 = dma.done %s306, 128
        $region44: #{tpu_custom_call.1} parent=35 // pred_fallthru
          _
        %s315 = sand.u32 %s25, 1
        %s316 = scalar_lea.sflag [#allocation8], %s315
        %s317 = sand.u32 %s119, 1
        %s318 = smul.addr %s317, 8
        %s319 = scalar_lea.vmem [#allocation9], %s318
        // Predicated region
        $region45: #{tpu_custom_call.1} parent=35 // pred_check
          %p320 = pneg %p132
        $region46: #{tpu_custom_call.1} parent=35 // pred_check_branch
          %322 = sbr.rel (%p320) target = $region48
        $region47: #{tpu_custom_call.1} parent=35 // pred_region
          %324 = dma.done %s316, 128
        $region48: #{tpu_custom_call.1} parent=35 // pred_fallthru
          _
        // Predicated region
        $region49: #{tpu_custom_call.1} parent=35 // pred_check
          %p325 = pneg %p153
        $region50: #{tpu_custom_call.1} parent=35 // pred_check_branch
          %327 = sbr.rel (%p325) target = $region52
        $region51: #{tpu_custom_call.1} parent=35 // pred_region
          %329 = dma.done [#allocation11], 768
        $region52: #{tpu_custom_call.1} parent=35 // pred_fallthru
          _
        %s330 = sand.u32 %s47, 1
        %s331 = scalar_lea.sflag [#allocation5], %s330
        %s332 = sand.u32 %s47, 1
        %s333 = smul.addr %s332, 64
        %s334 = scalar_lea.vmem [#allocation4], %s333
        %p335 = pneg %p60
        %p336 = pneg %p57
        %s337 = sand.u32 %s25, 1
        %s338 = scalar_lea.sflag [#allocation8], %s337
        %s339 = sand.u32 %s83, 1
        %s340 = smul.addr %s339, 8
        %s341 = scalar_lea.vmem [#allocation7], %s340
        %p342 = pneg %p96
        %p343 = pneg %p93
        %s344 = sand.u32 %s25, 1
        %s345 = scalar_lea.sflag [#allocation8], %s344
        %s346 = sand.u32 %s119, 1
        %s347 = smul.addr %s346, 8
        %s348 = scalar_lea.vmem [#allocation9], %s347
        %p349 = pneg %p132
        %p350 = pneg %p129
        %p351 = pneg %p153
        %p352 = pneg %p150
        %p353 = pneg %p181
        %p354 = pneg %p178
        %s355 = sand.u32 %s168, 1
        %s356 = scalar_lea.sflag [#allocation6], %s355
        %s357 = sand.u32 %s168, 1
        %s358 = smul.addr %s357, 64
        %s359 = scalar_lea.vmem [#allocation12], %s358
        %s360 = smul.u32 8, %s30
        %s361 = smul.u32 %s30, 8
        %s362 = ssub.s32 %s361, 1
        %p363 = scmp.gt.s32.totalorder %s362, 0
        %s364 = scalar_select %p363, %s362, 0
        %s365 = smul.u32 %s30, 8
        %s366 = sadd.s32 %s365, 8
        %p367 = scmp.lt.s32.totalorder %s366, 7
        %s368 = scalar_select %p367, %s366, 7
        %s369 = smul.u32 8, %s30
        %v370 = vld [vmem:[%s299] sm:$0xff]
        %v371 = vld [vmem:[%s299 + $0x8] sm:$0xff]
        %v372 = vld [vmem:[%s299 + $0x10] sm:$0xff]
        %v373 = vld [vmem:[%s299 + $0x18] sm:$0xff]
        %v374 = vld [vmem:[%s299 + $0x20] sm:$0xff]
        %v375 = vld [vmem:[%s299 + $0x28] sm:$0xff]
        %v376 = vld [vmem:[%s299 + $0x30] sm:$0xff]
        %v377 = vld [vmem:[%s299 + $0x38] sm:$0xff]
        %s378 = scalar_lea.vmem [#allocation2], 8
        %vm379 = vcmask 130048
        %380 = vst.msk [vmem:[%s378] sm:$0xff] %vm379, %v370
        %381 = vst.msk [vmem:[%s378 + $0x8] sm:$0xff] %vm379, %v371
        %382 = vst.msk [vmem:[%s378 + $0x10] sm:$0xff] %vm379, %v372
        %383 = vst.msk [vmem:[%s378 + $0x18] sm:$0xff] %vm379, %v373
        %384 = vst.msk [vmem:[%s378 + $0x20] sm:$0xff] %vm379, %v374
        %385 = vst.msk [vmem:[%s378 + $0x28] sm:$0xff] %vm379, %v375
        %386 = vst.msk [vmem:[%s378 + $0x30] sm:$0xff] %vm379, %v376
        %387 = vst.msk [vmem:[%s378 + $0x38] sm:$0xff] %vm379, %v377
        %p388 = scmp.gt.s32.totalorder %s30, 0
        // Predicated region
        $region53: #{tpu_custom_call.1} parent=35 // pred_check
          %p389 = pneg %p388
        $region54: #{tpu_custom_call.1} parent=35 // pred_check_branch
          %391 = sbr.rel (%p389) target = $region56
        $region55: #{tpu_custom_call.1} parent=35 // pred_region
          %v392 = vld [vmem:[%s309] sm:$0xff]
          %393 = vst.msk [vmem:[#allocation2] sm:$0xff] %vm379, %v392
        $region56: #{tpu_custom_call.1} parent=35 // pred_fallthru
          _
        %p394 = scmp.eq.s32.totalorder %s30, 0
        // Predicated region
        $region57: #{tpu_custom_call.1} parent=35 // pred_check
          %p395 = pneg %p394
        $region58: #{tpu_custom_call.1} parent=35 // pred_check_branch
          %397 = sbr.rel (%p395) target = $region60
        $region59: #{tpu_custom_call.1} parent=35 // pred_region
          %398 = vst.msk [vmem:[#allocation2] sm:$0xff] %vm379, 0.0
        $region60: #{tpu_custom_call.1} parent=35 // pred_fallthru
          _
        %p399 = scmp.lt.s32.totalorder %s30, 0
        // Predicated region
        $region61: #{tpu_custom_call.1} parent=35 // pred_check
          %p400 = pneg %p399
        $region62: #{tpu_custom_call.1} parent=35 // pred_check_branch
          %402 = sbr.rel (%p400) target = $region64
        $region63: #{tpu_custom_call.1} parent=35 // pred_region
          %v403 = vld [vmem:[%s319] sm:$0xff]
          %s404 = scalar_lea.vmem [#allocation2], 72
          %405 = vst.msk [vmem:[%s404] sm:$0xff] %vm379, %v403
        $region64: #{tpu_custom_call.1} parent=35 // pred_fallthru
          _
        // Predicated region
        $region65: #{tpu_custom_call.1} parent=35 // pred_check
          %p406 = pneg %p394
        $region66: #{tpu_custom_call.1} parent=35 // pred_check_branch
          %408 = sbr.rel (%p406) target = $region68
        $region67: #{tpu_custom_call.1} parent=35 // pred_region
          %s409 = scalar_lea.vmem [#allocation2], 72
          %410 = vst.msk [vmem:[%s409] sm:$0xff] %vm379, 0.0
        $region68: #{tpu_custom_call.1} parent=35 // pred_fallthru
          _
        %v411 = vlaneseq
        %v412 = vshrl.u32 %v411, 7
        %vm413 = vcmp.gt.s32.totalorder %v412, 0
        %vm414 = vcmp.lt.s32.totalorder %v412, 7
        %v415 = vld [vmem:[#allocation2] sm:$0xff]
        %v416 = vld [vmem:[#allocation2 + $0x8] sm:$0xff]
        %v417 = vld [vmem:[#allocation2 + $0x10] sm:$0xff]
        %v418 = vld [vmem:[#allocation2 + $0x18] sm:$0xff]
        %v419 = vld [vmem:[#allocation2 + $0x20] sm:$0xff]
        %v420 = vld [vmem:[#allocation2 + $0x28] sm:$0xff]
        %v421 = vld [vmem:[#allocation2 + $0x30] sm:$0xff]
        %v422 = vld [vmem:[#allocation2 + $0x38] sm:$0xff]
        %v423 = vld [vmem:[#allocation10] sm:$0xff]
        %v424 = vld [vmem:[#allocation10 + $0x8] sm:$0xff]
        %v426 = vsel %vm379, %v415, 0
        %v429 = vsel %vm379, %v416, 0
        %v432 = vsel %vm379, %v417, 0
        %v435 = vsel %vm379, %v418, 0
        %v438 = vsel %vm379, %v419, 0
        %v441 = vsel %vm379, %v420, 0
        %v444 = vsel %vm379, %v421, 0
        %v447 = vsel %vm379, %v422, 0
        %449 = vmatpush.msra.mxu0 0.0
        %450 = vmatpush.msra.mxu0 0.0
        %451 = vmatpush.msra.mxu0 0.0
        %452 = vmatpush.msra.mxu0 0.0
        %453 = vmatpush.msra.mxu0 0.0
        %454 = vmatpush.msra.mxu0 0.0
        %455 = vmatpush.msra.mxu0 0.0
        %456 = vmatpush.msra.mxu0 0.0
        %457 = vmatpush.msra.mxu0 0.0
        %458 = vmatpush.msra.mxu0 0.0
        %459 = vmatpush.msra.mxu0 0.0
        %460 = vmatpush.msra.mxu0 0.0
        %461 = vmatpush.msra.mxu0 0.0
        %462 = vmatpush.msra.mxu0 0.0
        %463 = vmatpush.msra.mxu0 %v424
        %464 = vmatpush.msra.mxu0 %v423
        %465 = vmatmul.f32.gmra.mxu0 %v426
        %v466 = vpop.f32.mrf.mxu0
        %v467 = vadd.f32 0.0, %v466
        %468 = vmatmul.f32.gmra.mxu0 %v429
        %v469 = vpop.f32.mrf.mxu0
        %v470 = vadd.f32 0.0, %v469
        %471 = vmatmul.f32.gmra.mxu0 %v432
        %v472 = vpop.f32.mrf.mxu0
        %v473 = vadd.f32 0.0, %v472
        %474 = vmatmul.f32.gmra.mxu0 %v435
        %v475 = vpop.f32.mrf.mxu0
        %v476 = vadd.f32 0.0, %v475
        %477 = vmatmul.f32.gmra.mxu0 %v438
        %v478 = vpop.f32.mrf.mxu0
        %v479 = vadd.f32 0.0, %v478
        %480 = vmatmul.f32.gmra.mxu0 %v441
        %v481 = vpop.f32.mrf.mxu0
        %v482 = vadd.f32 0.0, %v481
        %483 = vmatmul.f32.gmra.mxu0 %v444
        %v484 = vpop.f32.mrf.mxu0
        %v485 = vadd.f32 0.0, %v484
        %486 = vmatmul.f32.gmra.mxu0 %v447
        %v487 = vpop.f32.mrf.mxu0
        %v488 = vadd.f32 0.0, %v487
        %489 = vdwg.mxu0
        %v490 = vrot.slane %v467, 7
        %v491 = vrot.slane %v470, 7
        %v492 = vrot.slane %v473, 7
        %v493 = vrot.slane %v476, 7
        %v494 = vrot.slane %v479, 7
        %v495 = vrot.slane %v482, 7
        %v496 = vrot.slane %v485, 7
        %v497 = vrot.slane %v488, 7
        %vm498 = vcmp.lt.s32.totalorder %v412, 1
        %v499 = vsel %vm498, %v496, %v497
        %v500 = vsel %vm498, %v495, %v496
        %v501 = vsel %vm498, %v494, %v495
        %v502 = vsel %vm498, %v493, %v494
        %v503 = vsel %vm498, %v492, %v493
        %v504 = vsel %vm498, %v491, %v492
        %v505 = vsel %vm498, %v490, %v491
        %v506 = vsel %vm498, %v497, %v490
        %v507 = vsel %vm413, %v506, 0.0
        %v508 = vsel %vm413, %v505, 0.0
        %v509 = vsel %vm413, %v504, 0.0
        %v510 = vsel %vm413, %v503, 0.0
        %v511 = vsel %vm413, %v502, 0.0
        %v512 = vsel %vm413, %v501, 0.0
        %v513 = vsel %vm413, %v500, 0.0
        %v514 = vsel %vm413, %v499, 0.0
        %523 = vrot.lane.b32.xlu0 %v507, 8
        %v524 = vpop.permute.xlu0 %523
        %525 = vrot.lane.b32.xlu0 %v508, 8
        %v526 = vpop.permute.xlu0 %525
        %527 = vrot.lane.b32.xlu0 %v509, 8
        %v528 = vpop.permute.xlu0 %527
        %529 = vrot.lane.b32.xlu0 %v510, 8
        %v530 = vpop.permute.xlu0 %529
        %531 = vrot.lane.b32.xlu0 %v511, 8
        %v532 = vpop.permute.xlu0 %531
        %533 = vrot.lane.b32.xlu0 %v512, 8
        %v534 = vpop.permute.xlu0 %533
        %535 = vrot.lane.b32.xlu0 %v513, 8
        %v536 = vpop.permute.xlu0 %535
        %537 = vrot.lane.b32.xlu0 %v514, 8
        %v538 = vpop.permute.xlu0 %537
        %v547 = vadd.f32 %v467, %v524
        %v548 = vadd.f32 %v470, %v526
        %v549 = vadd.f32 %v473, %v528
        %v550 = vadd.f32 %v476, %v530
        %v551 = vadd.f32 %v479, %v532
        %v552 = vadd.f32 %v482, %v534
        %v553 = vadd.f32 %v485, %v536
        %v554 = vadd.f32 %v488, %v538
        %563 = vrot.lane.b32.xlu0 %v467, 112
        %v564 = vpop.permute.xlu0 %563
        %565 = vrot.lane.b32.xlu0 %v470, 112
        %v566 = vpop.permute.xlu0 %565
        %567 = vrot.lane.b32.xlu0 %v473, 112
        %v568 = vpop.permute.xlu0 %567
        %569 = vrot.lane.b32.xlu0 %v476, 112
        %v570 = vpop.permute.xlu0 %569
        %571 = vrot.lane.b32.xlu0 %v479, 112
        %v572 = vpop.permute.xlu0 %571
        %573 = vrot.lane.b32.xlu0 %v482, 112
        %v574 = vpop.permute.xlu0 %573
        %575 = vrot.lane.b32.xlu0 %v485, 112
        %v576 = vpop.permute.xlu0 %575
        %577 = vrot.lane.b32.xlu0 %v488, 112
        %v578 = vpop.permute.xlu0 %577
        %v587 = vrot.slane %v564, 1
        %v588 = vrot.slane %v566, 1
        %v589 = vrot.slane %v568, 1
        %v590 = vrot.slane %v570, 1
        %v591 = vrot.slane %v572, 1
        %v592 = vrot.slane %v574, 1
        %v593 = vrot.slane %v576, 1
        %v594 = vrot.slane %v578, 1
        %v595 = vsel %vm414, %v593, %v594
        %v596 = vsel %vm414, %v592, %v593
        %v597 = vsel %vm414, %v591, %v592
        %v598 = vsel %vm414, %v590, %v591
        %v599 = vsel %vm414, %v589, %v590
        %v600 = vsel %vm414, %v588, %v589
        %v601 = vsel %vm414, %v587, %v588
        %v602 = vsel %vm414, %v594, %v587
        %v603 = vsel %vm414, %v601, 0.0
        %v604 = vsel %vm414, %v600, 0.0
        %v605 = vsel %vm414, %v599, 0.0
        %v606 = vsel %vm414, %v598, 0.0
        %v607 = vsel %vm414, %v597, 0.0
        %v608 = vsel %vm414, %v596, 0.0
        %v609 = vsel %vm414, %v595, 0.0
        %v610 = vsel %vm414, %v602, 0.0
        %619 = vrot.lane.b32.xlu0 %v603, 8
        %v620 = vpop.permute.xlu0 %619
        %621 = vrot.lane.b32.xlu0 %v604, 8
        %v622 = vpop.permute.xlu0 %621
        %623 = vrot.lane.b32.xlu0 %v605, 8
        %v624 = vpop.permute.xlu0 %623
        %625 = vrot.lane.b32.xlu0 %v606, 8
        %v626 = vpop.permute.xlu0 %625
        %627 = vrot.lane.b32.xlu0 %v607, 8
        %v628 = vpop.permute.xlu0 %627
        %629 = vrot.lane.b32.xlu0 %v608, 8
        %v630 = vpop.permute.xlu0 %629
        %631 = vrot.lane.b32.xlu0 %v609, 8
        %v632 = vpop.permute.xlu0 %631
        %633 = vrot.lane.b32.xlu0 %v610, 8
        %v634 = vpop.permute.xlu0 %633
        %v643 = vadd.f32 %v547, %v620
        %v644 = vadd.f32 %v548, %v622
        %v645 = vadd.f32 %v549, %v624
        %v646 = vadd.f32 %v550, %v626
        %v647 = vadd.f32 %v551, %v628
        %v648 = vadd.f32 %v552, %v630
        %v649 = vadd.f32 %v553, %v632
        %v650 = vadd.f32 %v554, %v634
        %659 = vrot.lane.b32.xlu0 %v643, 120
        %v660 = vpop.permute.xlu0 %659
        %661 = vrot.lane.b32.xlu0 %v644, 120
        %v662 = vpop.permute.xlu0 %661
        %663 = vrot.lane.b32.xlu0 %v645, 120
        %v664 = vpop.permute.xlu0 %663
        %665 = vrot.lane.b32.xlu0 %v646, 120
        %v666 = vpop.permute.xlu0 %665
        %667 = vrot.lane.b32.xlu0 %v647, 120
        %v668 = vpop.permute.xlu0 %667
        %669 = vrot.lane.b32.xlu0 %v648, 120
        %v670 = vpop.permute.xlu0 %669
        %671 = vrot.lane.b32.xlu0 %v649, 120
        %v672 = vpop.permute.xlu0 %671
        %673 = vrot.lane.b32.xlu0 %v650, 120
        %v674 = vpop.permute.xlu0 %673
        %vm683 = vcmask 64512
        %684 = vst.msk [vmem:[#allocation3] sm:$0xff] %vm683, %v660
        %685 = vst.msk [vmem:[#allocation3 + $0x8] sm:$0xff] %vm683, %v662
        %686 = vst.msk [vmem:[#allocation3 + $0x10] sm:$0xff] %vm683, %v664
        %687 = vst.msk [vmem:[#allocation3 + $0x18] sm:$0xff] %vm683, %v666
        %688 = vst.msk [vmem:[#allocation3 + $0x20] sm:$0xff] %vm683, %v668
        %689 = vst.msk [vmem:[#allocation3 + $0x28] sm:$0xff] %vm683, %v670
        %690 = vst.msk [vmem:[#allocation3 + $0x30] sm:$0xff] %vm683, %v672
        %691 = vst.msk [vmem:[#allocation3 + $0x38] sm:$0xff] %vm683, %v674
        %v692 = vld [vmem:[%s378] sm:$0xff]
        %v693 = vld [vmem:[%s378 + $0x8] sm:$0xff]
        %v694 = vld [vmem:[%s378 + $0x10] sm:$0xff]
        %v695 = vld [vmem:[%s378 + $0x18] sm:$0xff]
        %v696 = vld [vmem:[%s378 + $0x20] sm:$0xff]
        %v697 = vld [vmem:[%s378 + $0x28] sm:$0xff]
        %v698 = vld [vmem:[%s378 + $0x30] sm:$0xff]
        %v699 = vld [vmem:[%s378 + $0x38] sm:$0xff]
        %s700 = scalar_lea.vmem [#allocation10], 16
        %v701 = vld [vmem:[%s700] sm:$0xff]
        %v702 = vld [vmem:[%s700 + $0x8] sm:$0xff]
        %v704 = vsel %vm379, %v692, 0
        %v707 = vsel %vm379, %v693, 0
        %v710 = vsel %vm379, %v694, 0
        %v713 = vsel %vm379, %v695, 0
        %v716 = vsel %vm379, %v696, 0
        %v719 = vsel %vm379, %v697, 0
        %v722 = vsel %vm379, %v698, 0
        %v725 = vsel %vm379, %v699, 0
        %727 = vmatpush.msra.mxu0 0.0
        %728 = vmatpush.msra.mxu0 0.0
        %729 = vmatpush.msra.mxu0 0.0
        %730 = vmatpush.msra.mxu0 0.0
        %731 = vmatpush.msra.mxu0 0.0
        %732 = vmatpush.msra.mxu0 0.0
        %733 = vmatpush.msra.mxu0 0.0
        %734 = vmatpush.msra.mxu0 0.0
        %735 = vmatpush.msra.mxu0 0.0
        %736 = vmatpush.msra.mxu0 0.0
        %737 = vmatpush.msra.mxu0 0.0
        %738 = vmatpush.msra.mxu0 0.0
        %739 = vmatpush.msra.mxu0 0.0
        %740 = vmatpush.msra.mxu0 0.0
        %741 = vmatpush.msra.mxu0 %v702
        %742 = vmatpush.msra.mxu0 %v701
        %743 = vmatmul.f32.gmra.mxu0 %v704
        %v744 = vpop.f32.mrf.mxu0
        %v745 = vadd.f32 0.0, %v744
        %746 = vmatmul.f32.gmra.mxu0 %v707
        %v747 = vpop.f32.mrf.mxu0
        %v748 = vadd.f32 0.0, %v747
        %749 = vmatmul.f32.gmra.mxu0 %v710
        %v750 = vpop.f32.mrf.mxu0
        %v751 = vadd.f32 0.0, %v750
        %752 = vmatmul.f32.gmra.mxu0 %v713
        %v753 = vpop.f32.mrf.mxu0
        %v754 = vadd.f32 0.0, %v753
        %755 = vmatmul.f32.gmra.mxu0 %v716
        %v756 = vpop.f32.mrf.mxu0
        %v757 = vadd.f32 0.0, %v756
        %758 = vmatmul.f32.gmra.mxu0 %v719
        %v759 = vpop.f32.mrf.mxu0
        %v760 = vadd.f32 0.0, %v759
        %761 = vmatmul.f32.gmra.mxu0 %v722
        %v762 = vpop.f32.mrf.mxu0
        %v763 = vadd.f32 0.0, %v762
        %764 = vmatmul.f32.gmra.mxu0 %v725
        %v765 = vpop.f32.mrf.mxu0
        %v766 = vadd.f32 0.0, %v765
        %767 = vdwg.mxu0
        %v768 = vrot.slane %v745, 7
        %v769 = vrot.slane %v748, 7
        %v770 = vrot.slane %v751, 7
        %v771 = vrot.slane %v754, 7
        %v772 = vrot.slane %v757, 7
        %v773 = vrot.slane %v760, 7
        %v774 = vrot.slane %v763, 7
        %v775 = vrot.slane %v766, 7
        %v776 = vsel %vm498, %v774, %v775
        %v777 = vsel %vm498, %v773, %v774
        %v778 = vsel %vm498, %v772, %v773
        %v779 = vsel %vm498, %v771, %v772
        %v780 = vsel %vm498, %v770, %v771
        %v781 = vsel %vm498, %v769, %v770
        %v782 = vsel %vm498, %v768, %v769
        %v783 = vsel %vm498, %v775, %v768
        %v784 = vsel %vm413, %v783, 0.0
        %v785 = vsel %vm413, %v782, 0.0
        %v786 = vsel %vm413, %v781, 0.0
        %v787 = vsel %vm413, %v780, 0.0
        %v788 = vsel %vm413, %v779, 0.0
        %v789 = vsel %vm413, %v778, 0.0
        %v790 = vsel %vm413, %v777, 0.0
        %v791 = vsel %vm413, %v776, 0.0
        %800 = vrot.lane.b32.xlu0 %v784, 8
        %v801 = vpop.permute.xlu0 %800
        %802 = vrot.lane.b32.xlu0 %v785, 8
        %v803 = vpop.permute.xlu0 %802
        %804 = vrot.lane.b32.xlu0 %v786, 8
        %v805 = vpop.permute.xlu0 %804
        %806 = vrot.lane.b32.xlu0 %v787, 8
        %v807 = vpop.permute.xlu0 %806
        %808 = vrot.lane.b32.xlu0 %v788, 8
        %v809 = vpop.permute.xlu0 %808
        %810 = vrot.lane.b32.xlu0 %v789, 8
        %v811 = vpop.permute.xlu0 %810
        %812 = vrot.lane.b32.xlu0 %v790, 8
        %v813 = vpop.permute.xlu0 %812
        %814 = vrot.lane.b32.xlu0 %v791, 8
        %v815 = vpop.permute.xlu0 %814
        %v824 = vadd.f32 %v745, %v801
        %v825 = vadd.f32 %v748, %v803
        %v826 = vadd.f32 %v751, %v805
        %v827 = vadd.f32 %v754, %v807
        %v828 = vadd.f32 %v757, %v809
        %v829 = vadd.f32 %v760, %v811
        %v830 = vadd.f32 %v763, %v813
        %v831 = vadd.f32 %v766, %v815
        %840 = vrot.lane.b32.xlu0 %v745, 112
        %v841 = vpop.permute.xlu0 %840
        %842 = vrot.lane.b32.xlu0 %v748, 112
        %v843 = vpop.permute.xlu0 %842
        %844 = vrot.lane.b32.xlu0 %v751, 112
        %v845 = vpop.permute.xlu0 %844
        %846 = vrot.lane.b32.xlu0 %v754, 112
        %v847 = vpop.permute.xlu0 %846
        %848 = vrot.lane.b32.xlu0 %v757, 112
        %v849 = vpop.permute.xlu0 %848
        %850 = vrot.lane.b32.xlu0 %v760, 112
        %v851 = vpop.permute.xlu0 %850
        %852 = vrot.lane.b32.xlu0 %v763, 112
        %v853 = vpop.permute.xlu0 %852
        %854 = vrot.lane.b32.xlu0 %v766, 112
        %v855 = vpop.permute.xlu0 %854
        %v864 = vrot.slane %v841, 1
        %v865 = vrot.slane %v843, 1
        %v866 = vrot.slane %v845, 1
        %v867 = vrot.slane %v847, 1
        %v868 = vrot.slane %v849, 1
        %v869 = vrot.slane %v851, 1
        %v870 = vrot.slane %v853, 1
        %v871 = vrot.slane %v855, 1
        %v872 = vsel %vm414, %v870, %v871
        %v873 = vsel %vm414, %v869, %v870
        %v874 = vsel %vm414, %v868, %v869
        %v875 = vsel %vm414, %v867, %v868
        %v876 = vsel %vm414, %v866, %v867
        %v877 = vsel %vm414, %v865, %v866
        %v878 = vsel %vm414, %v864, %v865
        %v879 = vsel %vm414, %v871, %v864
        %v880 = vsel %vm414, %v878, 0.0
        %v881 = vsel %vm414, %v877, 0.0
        %v882 = vsel %vm414, %v876, 0.0
        %v883 = vsel %vm414, %v875, 0.0
        %v884 = vsel %vm414, %v874, 0.0
        %v885 = vsel %vm414, %v873, 0.0
        %v886 = vsel %vm414, %v872, 0.0
        %v887 = vsel %vm414, %v879, 0.0
        %896 = vrot.lane.b32.xlu0 %v880, 8
        %v897 = vpop.permute.xlu0 %896
        %898 = vrot.lane.b32.xlu0 %v881, 8
        %v899 = vpop.permute.xlu0 %898
        %900 = vrot.lane.b32.xlu0 %v882, 8
        %v901 = vpop.permute.xlu0 %900
        %902 = vrot.lane.b32.xlu0 %v883, 8
        %v903 = vpop.permute.xlu0 %902
        %904 = vrot.lane.b32.xlu0 %v884, 8
        %v905 = vpop.permute.xlu0 %904
        %906 = vrot.lane.b32.xlu0 %v885, 8
        %v907 = vpop.permute.xlu0 %906
        %908 = vrot.lane.b32.xlu0 %v886, 8
        %v909 = vpop.permute.xlu0 %908
        %910 = vrot.lane.b32.xlu0 %v887, 8
        %v911 = vpop.permute.xlu0 %910
        %v920 = vadd.f32 %v824, %v897
        %v921 = vadd.f32 %v825, %v899
        %v922 = vadd.f32 %v826, %v901
        %v923 = vadd.f32 %v827, %v903
        %v924 = vadd.f32 %v828, %v905
        %v925 = vadd.f32 %v829, %v907
        %v926 = vadd.f32 %v830, %v909
        %v927 = vadd.f32 %v831, %v911
        %v928 = vld [vmem:[#allocation3] sm:$0xff]
        %v929 = vld [vmem:[#allocation3 + $0x8] sm:$0xff]
        %v930 = vld [vmem:[#allocation3 + $0x10] sm:$0xff]
        %v931 = vld [vmem:[#allocation3 + $0x18] sm:$0xff]
        %v932 = vld [vmem:[#allocation3 + $0x20] sm:$0xff]
        %v933 = vld [vmem:[#allocation3 + $0x28] sm:$0xff]
        %v934 = vld [vmem:[#allocation3 + $0x30] sm:$0xff]
        %v935 = vld [vmem:[#allocation3 + $0x38] sm:$0xff]
        %944 = vrot.lane.b32.xlu0 %v920, 120
        %v945 = vpop.permute.xlu0 %944
        %946 = vrot.lane.b32.xlu0 %v921, 120
        %v947 = vpop.permute.xlu0 %946
        %948 = vrot.lane.b32.xlu0 %v922, 120
        %v949 = vpop.permute.xlu0 %948
        %950 = vrot.lane.b32.xlu0 %v923, 120
        %v951 = vpop.permute.xlu0 %950
        %952 = vrot.lane.b32.xlu0 %v924, 120
        %v953 = vpop.permute.xlu0 %952
        %954 = vrot.lane.b32.xlu0 %v925, 120
        %v955 = vpop.permute.xlu0 %954
        %956 = vrot.lane.b32.xlu0 %v926, 120
        %v957 = vpop.permute.xlu0 %956
        %958 = vrot.lane.b32.xlu0 %v927, 120
        %v959 = vpop.permute.xlu0 %958
        %v968 = vadd.f32 %v928, %v945
        %v969 = vadd.f32 %v929, %v947
        %v970 = vadd.f32 %v930, %v949
        %v971 = vadd.f32 %v931, %v951
        %v972 = vadd.f32 %v932, %v953
        %v973 = vadd.f32 %v933, %v955
        %v974 = vadd.f32 %v934, %v957
        %v975 = vadd.f32 %v935, %v959
        %976 = vst.msk [vmem:[#allocation3] sm:$0xff] %vm683, %v968
        %977 = vst.msk [vmem:[#allocation3 + $0x8] sm:$0xff] %vm683, %v969
        %978 = vst.msk [vmem:[#allocation3 + $0x10] sm:$0xff] %vm683, %v970
        %979 = vst.msk [vmem:[#allocation3 + $0x18] sm:$0xff] %vm683, %v971
        %980 = vst.msk [vmem:[#allocation3 + $0x20] sm:$0xff] %vm683, %v972
        %981 = vst.msk [vmem:[#allocation3 + $0x28] sm:$0xff] %vm683, %v973
        %982 = vst.msk [vmem:[#allocation3 + $0x30] sm:$0xff] %vm683, %v974
        %983 = vst.msk [vmem:[#allocation3 + $0x38] sm:$0xff] %vm683, %v975
        %s984 = scalar_lea.vmem [#allocation2], 16
        %v985 = vld [vmem:[%s984] sm:$0xff]
        %v986 = vld [vmem:[%s984 + $0x8] sm:$0xff]
        %v987 = vld [vmem:[%s984 + $0x10] sm:$0xff]
        %v988 = vld [vmem:[%s984 + $0x18] sm:$0xff]
        %v989 = vld [vmem:[%s984 + $0x20] sm:$0xff]
        %v990 = vld [vmem:[%s984 + $0x28] sm:$0xff]
        %v991 = vld [vmem:[%s984 + $0x30] sm:$0xff]
        %v992 = vld [vmem:[%s984 + $0x38] sm:$0xff]
        %s993 = scalar_lea.vmem [#allocation10], 32
        %v994 = vld [vmem:[%s993] sm:$0xff]
        %v995 = vld [vmem:[%s993 + $0x8] sm:$0xff]
        %v997 = vsel %vm379, %v985, 0
        %v1000 = vsel %vm379, %v986, 0
        %v1003 = vsel %vm379, %v987, 0
        %v1006 = vsel %vm379, %v988, 0
        %v1009 = vsel %vm379, %v989, 0
        %v1012 = vsel %vm379, %v990, 0
        %v1015 = vsel %vm379, %v991, 0
        %v1018 = vsel %vm379, %v992, 0
        %1020 = vmatpush.msra.mxu0 0.0
        %1021 = vmatpush.msra.mxu0 0.0
        %1022 = vmatpush.msra.mxu0 0.0
        %1023 = vmatpush.msra.mxu0 0.0
        %1024 = vmatpush.msra.mxu0 0.0
        %1025 = vmatpush.msra.mxu0 0.0
        %1026 = vmatpush.msra.mxu0 0.0
        %1027 = vmatpush.msra.mxu0 0.0
        %1028 = vmatpush.msra.mxu0 0.0
        %1029 = vmatpush.msra.mxu0 0.0
        %1030 = vmatpush.msra.mxu0 0.0
        %1031 = vmatpush.msra.mxu0 0.0
        %1032 = vmatpush.msra.mxu0 0.0
        %1033 = vmatpush.msra.mxu0 0.0
        %1034 = vmatpush.msra.mxu0 %v995
        %1035 = vmatpush.msra.mxu0 %v994
        %1036 = vmatmul.f32.gmra.mxu0 %v997
        %v1037 = vpop.f32.mrf.mxu0
        %v1038 = vadd.f32 0.0, %v1037
        %1039 = vmatmul.f32.gmra.mxu0 %v1000
        %v1040 = vpop.f32.mrf.mxu0
        %v1041 = vadd.f32 0.0, %v1040
        %1042 = vmatmul.f32.gmra.mxu0 %v1003
        %v1043 = vpop.f32.mrf.mxu0
        %v1044 = vadd.f32 0.0, %v1043
        %1045 = vmatmul.f32.gmra.mxu0 %v1006
        %v1046 = vpop.f32.mrf.mxu0
        %v1047 = vadd.f32 0.0, %v1046
        %1048 = vmatmul.f32.gmra.mxu0 %v1009
        %v1049 = vpop.f32.mrf.mxu0
        %v1050 = vadd.f32 0.0, %v1049
        %1051 = vmatmul.f32.gmra.mxu0 %v1012
        %v1052 = vpop.f32.mrf.mxu0
        %v1053 = vadd.f32 0.0, %v1052
        %1054 = vmatmul.f32.gmra.mxu0 %v1015
        %v1055 = vpop.f32.mrf.mxu0
        %v1056 = vadd.f32 0.0, %v1055
        %1057 = vmatmul.f32.gmra.mxu0 %v1018
        %v1058 = vpop.f32.mrf.mxu0
        %v1059 = vadd.f32 0.0, %v1058
        %1060 = vdwg.mxu0
        %v1061 = vrot.slane %v1038, 7
        %v1062 = vrot.slane %v1041, 7
        %v1063 = vrot.slane %v1044, 7
        %v1064 = vrot.slane %v1047, 7
        %v1065 = vrot.slane %v1050, 7
        %v1066 = vrot.slane %v1053, 7
        %v1067 = vrot.slane %v1056, 7
        %v1068 = vrot.slane %v1059, 7
        %v1069 = vsel %vm498, %v1067, %v1068
        %v1070 = vsel %vm498, %v1066, %v1067
        %v1071 = vsel %vm498, %v1065, %v1066
        %v1072 = vsel %vm498, %v1064, %v1065
        %v1073 = vsel %vm498, %v1063, %v1064
        %v1074 = vsel %vm498, %v1062, %v1063
        %v1075 = vsel %vm498, %v1061, %v1062
        %v1076 = vsel %vm498, %v1068, %v1061
        %v1077 = vsel %vm413, %v1076, 0.0
        %v1078 = vsel %vm413, %v1075, 0.0
        %v1079 = vsel %vm413, %v1074, 0.0
        %v1080 = vsel %vm413, %v1073, 0.0
        %v1081 = vsel %vm413, %v1072, 0.0
        %v1082 = vsel %vm413, %v1071, 0.0
        %v1083 = vsel %vm413, %v1070, 0.0
        %v1084 = vsel %vm413, %v1069, 0.0
        %1093 = vrot.lane.b32.xlu0 %v1077, 8
        %v1094 = vpop.permute.xlu0 %1093
        %1095 = vrot.lane.b32.xlu0 %v1078, 8
        %v1096 = vpop.permute.xlu0 %1095
        %1097 = vrot.lane.b32.xlu0 %v1079, 8
        %v1098 = vpop.permute.xlu0 %1097
        %1099 = vrot.lane.b32.xlu0 %v1080, 8
        %v1100 = vpop.permute.xlu0 %1099
        %1101 = vrot.lane.b32.xlu0 %v1081, 8
        %v1102 = vpop.permute.xlu0 %1101
        %1103 = vrot.lane.b32.xlu0 %v1082, 8
        %v1104 = vpop.permute.xlu0 %1103
        %1105 = vrot.lane.b32.xlu0 %v1083, 8
        %v1106 = vpop.permute.xlu0 %1105
        %1107 = vrot.lane.b32.xlu0 %v1084, 8
        %v1108 = vpop.permute.xlu0 %1107
        %v1117 = vadd.f32 %v1038, %v1094
        %v1118 = vadd.f32 %v1041, %v1096
        %v1119 = vadd.f32 %v1044, %v1098
        %v1120 = vadd.f32 %v1047, %v1100
        %v1121 = vadd.f32 %v1050, %v1102
        %v1122 = vadd.f32 %v1053, %v1104
        %v1123 = vadd.f32 %v1056, %v1106
        %v1124 = vadd.f32 %v1059, %v1108
        %1133 = vrot.lane.b32.xlu0 %v1038, 112
        %v1134 = vpop.permute.xlu0 %1133
        %1135 = vrot.lane.b32.xlu0 %v1041, 112
        %v1136 = vpop.permute.xlu0 %1135
        %1137 = vrot.lane.b32.xlu0 %v1044, 112
        %v1138 = vpop.permute.xlu0 %1137
        %1139 = vrot.lane.b32.xlu0 %v1047, 112
        %v1140 = vpop.permute.xlu0 %1139
        %1141 = vrot.lane.b32.xlu0 %v1050, 112
        %v1142 = vpop.permute.xlu0 %1141
        %1143 = vrot.lane.b32.xlu0 %v1053, 112
        %v1144 = vpop.permute.xlu0 %1143
        %1145 = vrot.lane.b32.xlu0 %v1056, 112
        %v1146 = vpop.permute.xlu0 %1145
        %1147 = vrot.lane.b32.xlu0 %v1059, 112
        %v1148 = vpop.permute.xlu0 %1147
        %v1157 = vrot.slane %v1134, 1
        %v1158 = vrot.slane %v1136, 1
        %v1159 = vrot.slane %v1138, 1
        %v1160 = vrot.slane %v1140, 1
        %v1161 = vrot.slane %v1142, 1
        %v1162 = vrot.slane %v1144, 1
        %v1163 = vrot.slane %v1146, 1
        %v1164 = vrot.slane %v1148, 1
        %v1165 = vsel %vm414, %v1163, %v1164
        %v1166 = vsel %vm414, %v1162, %v1163
        %v1167 = vsel %vm414, %v1161, %v1162
        %v1168 = vsel %vm414, %v1160, %v1161
        %v1169 = vsel %vm414, %v1159, %v1160
        %v1170 = vsel %vm414, %v1158, %v1159
        %v1171 = vsel %vm414, %v1157, %v1158
        %v1172 = vsel %vm414, %v1164, %v1157
        %v1173 = vsel %vm414, %v1171, 0.0
        %v1174 = vsel %vm414, %v1170, 0.0
        %v1175 = vsel %vm414, %v1169, 0.0
        %v1176 = vsel %vm414, %v1168, 0.0
        %v1177 = vsel %vm414, %v1167, 0.0
        %v1178 = vsel %vm414, %v1166, 0.0
        %v1179 = vsel %vm414, %v1165, 0.0
        %v1180 = vsel %vm414, %v1172, 0.0
        %1189 = vrot.lane.b32.xlu0 %v1173, 8
        %v1190 = vpop.permute.xlu0 %1189
        %1191 = vrot.lane.b32.xlu0 %v1174, 8
        %v1192 = vpop.permute.xlu0 %1191
        %1193 = vrot.lane.b32.xlu0 %v1175, 8
        %v1194 = vpop.permute.xlu0 %1193
        %1195 = vrot.lane.b32.xlu0 %v1176, 8
        %v1196 = vpop.permute.xlu0 %1195
        %1197 = vrot.lane.b32.xlu0 %v1177, 8
        %v1198 = vpop.permute.xlu0 %1197
        %1199 = vrot.lane.b32.xlu0 %v1178, 8
        %v1200 = vpop.permute.xlu0 %1199
        %1201 = vrot.lane.b32.xlu0 %v1179, 8
        %v1202 = vpop.permute.xlu0 %1201
        %1203 = vrot.lane.b32.xlu0 %v1180, 8
        %v1204 = vpop.permute.xlu0 %1203
        %v1213 = vadd.f32 %v1117, %v1190
        %v1214 = vadd.f32 %v1118, %v1192
        %v1215 = vadd.f32 %v1119, %v1194
        %v1216 = vadd.f32 %v1120, %v1196
        %v1217 = vadd.f32 %v1121, %v1198
        %v1218 = vadd.f32 %v1122, %v1200
        %v1219 = vadd.f32 %v1123, %v1202
        %v1220 = vadd.f32 %v1124, %v1204
        %v1221 = vld [vmem:[#allocation3] sm:$0xff]
        %v1222 = vld [vmem:[#allocation3 + $0x8] sm:$0xff]
        %v1223 = vld [vmem:[#allocation3 + $0x10] sm:$0xff]
        %v1224 = vld [vmem:[#allocation3 + $0x18] sm:$0xff]
        %v1225 = vld [vmem:[#allocation3 + $0x20] sm:$0xff]
        %v1226 = vld [vmem:[#allocation3 + $0x28] sm:$0xff]
        %v1227 = vld [vmem:[#allocation3 + $0x30] sm:$0xff]
        %v1228 = vld [vmem:[#allocation3 + $0x38] sm:$0xff]
        %1237 = vrot.lane.b32.xlu0 %v1213, 120
        %v1238 = vpop.permute.xlu0 %1237
        %1239 = vrot.lane.b32.xlu0 %v1214, 120
        %v1240 = vpop.permute.xlu0 %1239
        %1241 = vrot.lane.b32.xlu0 %v1215, 120
        %v1242 = vpop.permute.xlu0 %1241
        %1243 = vrot.lane.b32.xlu0 %v1216, 120
        %v1244 = vpop.permute.xlu0 %1243
        %1245 = vrot.lane.b32.xlu0 %v1217, 120
        %v1246 = vpop.permute.xlu0 %1245
        %1247 = vrot.lane.b32.xlu0 %v1218, 120
        %v1248 = vpop.permute.xlu0 %1247
        %1249 = vrot.lane.b32.xlu0 %v1219, 120
        %v1250 = vpop.permute.xlu0 %1249
        %1251 = vrot.lane.b32.xlu0 %v1220, 120
        %v1252 = vpop.permute.xlu0 %1251
        %v1261 = vadd.f32 %v1221, %v1238
        %v1262 = vadd.f32 %v1222, %v1240
        %v1263 = vadd.f32 %v1223, %v1242
        %v1264 = vadd.f32 %v1224, %v1244
        %v1265 = vadd.f32 %v1225, %v1246
        %v1266 = vadd.f32 %v1226, %v1248
        %v1267 = vadd.f32 %v1227, %v1250
        %v1268 = vadd.f32 %v1228, %v1252
        %1269 = vst.msk [vmem:[#allocation3] sm:$0xff] %vm683, %v1261
        %1270 = vst.msk [vmem:[#allocation3 + $0x8] sm:$0xff] %vm683, %v1262
        %1271 = vst.msk [vmem:[#allocation3 + $0x10] sm:$0xff] %vm683, %v1263
        %1272 = vst.msk [vmem:[#allocation3 + $0x18] sm:$0xff] %vm683, %v1264
        %1273 = vst.msk [vmem:[#allocation3 + $0x20] sm:$0xff] %vm683, %v1265
        %1274 = vst.msk [vmem:[#allocation3 + $0x28] sm:$0xff] %vm683, %v1266
        %1275 = vst.msk [vmem:[#allocation3 + $0x30] sm:$0xff] %vm683, %v1267
        %1276 = vst.msk [vmem:[#allocation3 + $0x38] sm:$0xff] %vm683, %v1268
        %v1277 = vld [vmem:[#allocation3] sm:$0xff]
        %v1278 = vld [vmem:[#allocation3 + $0x8] sm:$0xff]
        %v1279 = vld [vmem:[#allocation3 + $0x10] sm:$0xff]
        %v1280 = vld [vmem:[#allocation3 + $0x18] sm:$0xff]
        %v1281 = vld [vmem:[#allocation3 + $0x20] sm:$0xff]
        %v1282 = vld [vmem:[#allocation3 + $0x28] sm:$0xff]
        %v1283 = vld [vmem:[#allocation3 + $0x30] sm:$0xff]
        %v1284 = vld [vmem:[#allocation3 + $0x38] sm:$0xff]
        %1285 = vst.msk [vmem:[%s359] sm:$0xff] %vm683, %v1277
        %1286 = vst.msk [vmem:[%s359 + $0x8] sm:$0xff] %vm683, %v1278
        %1287 = vst.msk [vmem:[%s359 + $0x10] sm:$0xff] %vm683, %v1279
        %1288 = vst.msk [vmem:[%s359 + $0x18] sm:$0xff] %vm683, %v1280
        %1289 = vst.msk [vmem:[%s359 + $0x20] sm:$0xff] %vm683, %v1281
        %1290 = vst.msk [vmem:[%s359 + $0x28] sm:$0xff] %vm683, %v1282
        %1291 = vst.msk [vmem:[%s359 + $0x30] sm:$0xff] %vm683, %v1283
        %1292 = vst.msk [vmem:[%s359 + $0x38] sm:$0xff] %vm683, %v1284
        %s1293 = sand.u32 %s168, 1
        %s1294 = scalar_lea.sflag [#allocation6], %s1293
        %s1295 = sand.u32 %s168, 1
        %s1296 = smul.addr %s1295, 64
        %s1297 = scalar_lea.vmem [#allocation12], %s1296
        // Predicated region
        $region69: #{tpu_custom_call.1} parent=35 // pred_check
          %p1298 = pneg %p178
        $region70: #{tpu_custom_call.1} parent=35 // pred_check_branch
          %1300 = sbr.rel (%p1298) target = $region72
        $region71: #{tpu_custom_call.1} parent=35 // pred_region
          %s1301 = smul.u32 8, %s30
          %1303 = vsyncadd %s1294, 0
          %s1304 = smul.addr %s29, 8
          %s1305 = sadd.s32 %s1301, %s1304
          %s1306 = smul.addr %s1305, 8
          %s1307 = scalar_lea.hbm %s4, %s1306
          %s1308 = sshll.u32 %s1297, 4
          %s1309 = int_to_ptr.vmem [resolvable:$true] %s1308
          %s1310 = sshll.u32 %s1307, 4
          %s1311 = int_to_ptr.hbm [resolvable:$true] %s1310
          %1316 = dma.vmem_to_hbm [thread:$0]  %s1309, 1024, %s1311, %s1294, 128, 128, 8
        $region72: #{tpu_custom_call.1} parent=35 // pred_fallthru
          _
      $region36: #{tpu_custom_call.1} parent=5 // pred_fallthru
        _
      %p1317 = scmp.le.s32.totalorder 2, %s20
      // Predicated region
      $region73: #{tpu_custom_call.1} parent=5 // pred_check
        %p1318 = pneg %p1317
      $region74: #{tpu_custom_call.1} parent=5 // pred_check_branch
        %1320 = sbr.rel (%p1318) target = $region76
      $region75: #{tpu_custom_call.1} parent=5 // pred_region
        %s1321 = ssub.s32 %s20, 2
        // Predicated region
        $region77: #{tpu_custom_call.1} parent=75 // pred_check
          %p1322 = pneg %p184
        $region78: #{tpu_custom_call.1} parent=75 // pred_check_branch
          %1324 = sbr.rel (%p1322) target = $region80
        $region79: #{tpu_custom_call.1} parent=75 // pred_region
          %s1325 = sand.u32 %s169, 1
          %s1326 = scalar_lea.sflag [#allocation6], %s1325
          %s1327 = sand.u32 %s169, 1
          %s1328 = smul.addr %s1327, 64
          %s1329 = scalar_lea.vmem [#allocation12], %s1328
          %1331 = dma.done %s1326, 1024
        $region80: #{tpu_custom_call.1} parent=75 // pred_fallthru
          _
      $region76: #{tpu_custom_call.1} parent=5 // pred_fallthru
        _
    $region6: #{tpu_custom_call.1} parent=1 // loop_footer
      %s24 = sadd.s32 1, %s20
    $region7: #{tpu_custom_call.1} parent=1 // loop_footer_branch
      %19 = sbr.rel target = $region3
    $region8: #{tpu_custom_call.1} parent=1 // loop_exit
      _
    %1332 = vsyncpa [#allocation5], 1
    %s1333 = scalar_lea.sflag [#allocation5], 1
    %1334 = vsyncpa %s1333, 1
    %1335 = vsyncpa [#allocation8], 1
    %s1336 = scalar_lea.sflag [#allocation8], 1
    %1337 = vsyncpa %s1336, 1
    %1338 = vsyncpa [#allocation11], 1
    %1339 = vsyncpa [#allocation6], 1
    %s1340 = scalar_lea.sflag [#allocation6], 1
    %1341 = vsyncpa %s1340, 1

</llo_original>
